<compile_context>
chip_gen: v7x
topology: tpu7x:2x2x1
jax: 0.10.0
libtpu: 0.0.40
codegen_flags: <defaults>
</compile_context>

<pallas_src>
import math

import jax
import jax.numpy as jnp
import numpy as np
from jax import lax
from jax.experimental import pallas as pl
from jax.experimental.pallas import tpu as pltpu

EPS = 1e-5          # PyTorch GroupNorm default
NUM_GROUPS = 32     # normalization() uses 32 groups


def _silu(v):
    return v * jax.nn.sigmoid(v)


def _round_up(x, m):
    return ((x + m - 1) // m) * m


# ----------------------------------------------------------------------------
# Kernel: one grid step processes a tile of TN rows; all matmuls / group-norms /
# SiLU / adds happen inside the kernel.  All channel axes arrive padded to a
# multiple of 128 lanes; padded lanes carry exact zeros end-to-end.
# ----------------------------------------------------------------------------
def _make_kernel(matmul_dtype=None):
    def fcblock_kernel(x_ref, emb_ref,
                       g1_ref, b1_ref, w_in_ref,
                       w_emb_ref, b_h_ref,
                       g2_ref, b2_ref, w_out_ref,
                       w_skip_ref, b_fin_ref,
                       gmat_in_ref, gmat_out_ref,
                       o_ref):
        x = x_ref[...].astype(jnp.float32)        # (TN, C_pad)
        emb = emb_ref[...].astype(jnp.float32)    # (TN, E_pad)

        def mm(a, w_ref):
            # Weight matmul; optionally bf16 inputs with fp32 accumulation.
            w = w_ref[...]
            if matmul_dtype is not None:
                a = a.astype(matmul_dtype)
                w = w.astype(matmul_dtype)
            return jnp.dot(a, w, preferred_element_type=jnp.float32)

        def group_norm(v, gmat, gamma, beta):
            # gmat is the fused (Ch_pad, Ch_pad) group-average projection;
            # statistics stay fp32 (GroupNorm32 semantics), two-pass variance.
            mean = jnp.dot(v, gmat, preferred_element_type=jnp.float32)
            d = v - mean
            var = jnp.dot(d * d, gmat, preferred_element_type=jnp.float32)
            return d * lax.rsqrt(var + EPS) * gamma + beta

        # in_layers: GroupNorm32 -> SiLU -> Conv2d(C, Cout, 1)  (1x1 conv == matmul)
        h = group_norm(x, gmat_in_ref[...], g1_ref[...], b1_ref[...])
        h = _silu(h)
        h = mm(h, w_in_ref)

        # emb_layers: SiLU -> Linear(E, Cout); broadcast add over (1x1) spatial.
        e = mm(_silu(emb), w_emb_ref)
        h = h + e + b_h_ref[...]                  # b_h = b_in + b_emb (folded)

        # out_layers: GroupNorm32 -> SiLU -> Dropout -> Conv2d(Cout, Cout, 1)
        h2 = group_norm(h, gmat_out_ref[...], g2_ref[...], b2_ref[...])
        h2 = _silu(h2)
        # TODO(synk): Dropout implemented as identity (eval mode / p = 0.0).
        h2 = mm(h2, w_out_ref)

        # skip_connection: 1x1 conv when Cout != C (identity passed as I if equal)
        skip = mm(x, w_skip_ref)

        o_ref[...] = (skip + h2 + b_fin_ref[...]).astype(o_ref.dtype)

    return fcblock_kernel


# ----------------------------------------------------------------------------
# Wrapper glue
# ----------------------------------------------------------------------------
def _fused_group_matrix(channels, padded, groups):
    # Fused mean-projection @ broadcast-back matrix, built with numpy at trace
    # time so it is a baked constant.  Padded rows/cols are zero, so padded
    # channels contribute nothing and receive zero statistics.
    gs = channels // groups
    gid = np.arange(channels) // gs
    onehot = (gid[:, None] == np.arange(groups)[None, :]).astype(np.float32)  # (C, G)
    m = (onehot / gs) @ onehot.T                                              # (C, C)
    mp = np.zeros((padded, padded), np.float32)
    mp[:channels, :channels] = m
    return jnp.asarray(mp)


def _pad2(a, rows, cols):
    a = jnp.asarray(a)
    return jnp.pad(a, ((0, rows - a.shape[0]), (0, cols - a.shape[1])))


def fcblock_multidim_forward(x, emb, params, channels_multidim,
                             out_channels_multidim, tile_n=512,
                             matmul_dtype=None):
    n_dims = len(channels_multidim)
    lead = x.shape[:-n_dims]
    C = math.prod(channels_multidim)
    Cout = math.prod(out_channels_multidim)
    assert C % NUM_GROUPS == 0, "channels must be divisible by 32 groups"
    assert Cout % NUM_GROUPS == 0, "out_channels must be divisible by 32 groups"

    out_dtype = x.dtype

    x2 = x.reshape((-1, C))                       # (N, C), original dtype
    emb2 = emb.reshape((-1, emb.shape[-1]))       # (N, E), original dtype
    N, E = x2.shape[0], emb2.shape[-1]

    # Lane-dense channel padding (multiples of 128) + row tiling.
    C_pad = _round_up(C, 128)
    E_pad = _round_up(E, 128)
    Cout_pad = _round_up(Cout, 128)

    tile_n = min(tile_n, _round_up(N, 128))       # big tiles, clamped for tiny N
    n_pad = pl.cdiv(N, tile_n) * tile_n

    x2 = _pad2(x2, n_pad, C_pad)
    emb2 = _pad2(emb2, n_pad, E_pad)

    f32 = jnp.float32
    g1 = _pad2(params["g1"].astype(f32), 1, C_pad)
    b1 = _pad2(params["b1"].astype(f32), 1, C_pad)
    g2 = _pad2(params["g2"].astype(f32), 1, Cout_pad)
    b2 = _pad2(params["b2"].astype(f32), 1, Cout_pad)
    w_in = _pad2(params["w_in"].astype(f32), C_pad, Cout_pad)
    w_emb = _pad2(params["w_emb"].astype(f32), E_pad, Cout_pad)
    w_out = _pad2(params["w_out"].astype(f32), Cout_pad, Cout_pad)
    w_skip = _pad2(params["w_skip"].astype(f32), C_pad, Cout_pad)
    # Fold constant biases: h gets (b_in + b_emb); output gets (b_out + b_skip).
    b_h = _pad2((params["b_in"] + params["b_emb"]).astype(f32), 1, Cout_pad)
    b_fin = _pad2((params["b_out"] + params["b_skip"]).astype(f32), 1, Cout_pad)

    gmat_in = _fused_group_matrix(C, C_pad, NUM_GROUPS)
    gmat_out = _fused_group_matrix(Cout, Cout_pad, NUM_GROUPS)

    args = (x2, emb2,
            g1, b1, w_in,
            w_emb, b_h,
            g2, b2, w_out,
            w_skip, b_fin,
            gmat_in, gmat_out)

    in_specs = ([pl.BlockSpec((tile_n, C_pad), lambda i: (i, 0)),
                 pl.BlockSpec((tile_n, E_pad), lambda i: (i, 0))] +
                [pl.BlockSpec(a.shape, lambda i: (0, 0)) for a in args[2:]])

    out = pl.pallas_call(
        _make_kernel(matmul_dtype),
        out_shape=jax.ShapeDtypeStruct((n_pad, Cout_pad), out_dtype),
        grid=(n_pad // tile_n,),
        in_specs=in_specs,
        out_specs=pl.BlockSpec((tile_n, Cout_pad), lambda i: (i, 0)),
        compiler_params=pltpu.CompilerParams(dimension_semantics=("parallel",)),
    )(*args)

    y = out[:N, :Cout]
    return y.reshape(*lead, *out_channels_multidim)


# ----------------------------------------------------------------------------
# Pure-JAX reference (mirrors the PyTorch forward) for validation.
# ----------------------------------------------------------------------------
def reference(x, emb, params, channels_multidim, out_channels_multidim):
    C = math.prod(channels_multidim)
    Cout = math.prod(out_channels_multidim)
    lead = x.shape[:-len(channels_multidim)]
    xr = x.reshape(-1, C).astype(jnp.float32)
    em = emb.reshape(-1, emb.shape[-1]).astype(jnp.float32)

    def gn(v, gamma, beta):
        n, ch = v.shape
        g = v.reshape(n, NUM_GROUPS, ch // NUM_GROUPS)
        m = g.mean(-1, keepdims=True)
        var = ((g - m) ** 2).mean(-1, keepdims=True)
        out = (g - m) / jnp.sqrt(var + EPS)
        return out.reshape(n, ch) * gamma + beta

    h = _silu(gn(xr, params["g1"], params["b1"])) @ params["w_in"] + params["b_in"]
    e = _silu(em) @ params["w_emb"] + params["b_emb"]
    h = h + e
    h2 = _silu(gn(h, params["g2"], params["b2"])) @ params["w_out"] + params["b_out"]
    skip = xr @ params["w_skip"] + params["b_skip"]
    return (skip + h2).reshape(*lead, *out_channels_multidim)


if __name__ == "__main__":
    key = jax.random.PRNGKey(0)

    # FCBlock_MultiDim(channels=[4,16], emb_channels=32, dropout=0.0,
    #                  out_channels=[6,16])
    channels_multidim = [4, 16]       # C = 64   (divisible by 32 groups)
    out_channels_multidim = [6, 16]   # Cout = 96 (divisible by 32 groups)
    emb_channels = 32
    B = 2
    C = math.prod(channels_multidim)
    Cout = math.prod(out_channels_multidim)

    ks = jax.random.split(key, 10)
    params = {
        # GroupNorm affine params (PyTorch default init: weight=1, bias=0)
        "g1": jnp.ones((1, C), jnp.float32),
        "b1": jnp.zeros((1, C), jnp.float32),
        # Conv2d(C, Cout, 1) weights stored as (C, Cout) for right-multiply
        "w_in": 0.05 * jax.random.normal(ks[0], (C, Cout), jnp.float32),
        "b_in": 0.05 * jax.random.normal(ks[1], (1, Cout), jnp.float32),
        # Linear(E, Cout) stored as (E, Cout)
        "w_emb": 0.05 * jax.random.normal(ks[2], (emb_channels, Cout), jnp.float32),
        "b_emb": 0.05 * jax.random.normal(ks[3], (1, Cout), jnp.float32),
        "g2": jnp.ones((1, Cout), jnp.float32),
        "b2": jnp.zeros((1, Cout), jnp.float32),
        # NOTE: module __init__ wraps this conv in zero_module() (zeros); random
        # deterministic init here so the test exercises the whole datapath.
        "w_out": 0.05 * jax.random.normal(ks[4], (Cout, Cout), jnp.float32),
        "b_out": 0.05 * jax.random.normal(ks[5], (1, Cout), jnp.float32),
        # skip_connection conv (Cout != C here; pass identity/zeros if equal)
        "w_skip": 0.05 * jax.random.normal(ks[6], (C, Cout), jnp.float32),
        "b_skip": 0.05 * jax.random.normal(ks[7], (1, Cout), jnp.float32),
    }

    x = jax.random.normal(ks[8], (B, *channels_multidim), jnp.float32)
    emb = jax.random.normal(ks[9], (B, emb_channels), jnp.float32)

    y = fcblock_multidim_forward(x, emb, params, channels_multidim,
                                 out_channels_multidim)
    y = jax.block_until_ready(y)
    assert y.shape == (B, *out_channels_multidim), y.shape

    y_ref = reference(x, emb, params, channels_multidim, out_channels_multidim)
    np.testing.assert_allclose(np.asarray(y), np.asarray(y_ref),
                               atol=2e-4, rtol=2e-4)
    print("KERNEL_OK")
</pallas_src>

<mosaic_0001>
module attributes {stable_mosaic.version = 11 : i64} {
  func.func @fcblock_kernel(%arg0: i32, %arg1: memref<128x128xf32, #tpu.memory_space<vmem>>, %arg2: memref<128x128xf32, #tpu.memory_space<vmem>>, %arg3: memref<1x128xf32, #tpu.memory_space<vmem>>, %arg4: memref<1x128xf32, #tpu.memory_space<vmem>>, %arg5: memref<128x128xf32, #tpu.memory_space<vmem>>, %arg6: memref<128x128xf32, #tpu.memory_space<vmem>>, %arg7: memref<1x128xf32, #tpu.memory_space<vmem>>, %arg8: memref<1x128xf32, #tpu.memory_space<vmem>>, %arg9: memref<1x128xf32, #tpu.memory_space<vmem>>, %arg10: memref<128x128xf32, #tpu.memory_space<vmem>>, %arg11: memref<128x128xf32, #tpu.memory_space<vmem>>, %arg12: memref<1x128xf32, #tpu.memory_space<vmem>>, %arg13: memref<128x128xf32, #tpu.memory_space<vmem>>, %arg14: memref<128x128xf32, #tpu.memory_space<vmem>>, %arg15: memref<128x128xf32, #tpu.memory_space<vmem>>) attributes {dimension_semantics = [#tpu.dimension_semantics<parallel>], iteration_bounds = array<i64: 1>, scalar_prefetch = 0 : i64, scratch_operands = 0 : i64, tpu.core_type = #tpu.core_type<tc>, window_params = [{transform_indices = @transform_0, window_bounds = array<i64: 128, 128>}, {transform_indices = @transform_1, window_bounds = array<i64: 128, 128>}, {pipeline_mode = #tpu.pipeline_mode<synchronous>, transform_indices = @transform_2, window_bounds = array<i64: 1, 128>}, {pipeline_mode = #tpu.pipeline_mode<synchronous>, transform_indices = @transform_3, window_bounds = array<i64: 1, 128>}, {pipeline_mode = #tpu.pipeline_mode<synchronous>, transform_indices = @transform_4, window_bounds = array<i64: 128, 128>}, {pipeline_mode = #tpu.pipeline_mode<synchronous>, transform_indices = @transform_5, window_bounds = array<i64: 128, 128>}, {pipeline_mode = #tpu.pipeline_mode<synchronous>, transform_indices = @transform_6, window_bounds = array<i64: 1, 128>}, {pipeline_mode = #tpu.pipeline_mode<synchronous>, transform_indices = @transform_7, window_bounds = array<i64: 1, 128>}, {pipeline_mode = #tpu.pipeline_mode<synchronous>, transform_indices = @transform_8, window_bounds = array<i64: 1, 128>}, {pipeline_mode = #tpu.pipeline_mode<synchronous>, transform_indices = @transform_9, window_bounds = array<i64: 128, 128>}, {pipeline_mode = #tpu.pipeline_mode<synchronous>, transform_indices = @transform_10, window_bounds = array<i64: 128, 128>}, {pipeline_mode = #tpu.pipeline_mode<synchronous>, transform_indices = @transform_11, window_bounds = array<i64: 1, 128>}, {pipeline_mode = #tpu.pipeline_mode<synchronous>, transform_indices = @transform_12, window_bounds = array<i64: 128, 128>}, {pipeline_mode = #tpu.pipeline_mode<synchronous>, transform_indices = @transform_13, window_bounds = array<i64: 128, 128>}, {transform_indices = @transform_14, window_bounds = array<i64: 128, 128>}]} {
    %c0 = arith.constant 0 : index
    %c0_0 = arith.constant 0 : index
    %0 = vector.load %arg1[%c0, %c0_0] : memref<128x128xf32, #tpu.memory_space<vmem>>, vector<128x128xf32>
    %c0_1 = arith.constant 0 : index
    %c0_2 = arith.constant 0 : index
    %1 = vector.load %arg2[%c0_1, %c0_2] : memref<128x128xf32, #tpu.memory_space<vmem>>, vector<128x128xf32>
    %c0_3 = arith.constant 0 : index
    %c0_4 = arith.constant 0 : index
    %2 = vector.load %arg13[%c0_3, %c0_4] : memref<128x128xf32, #tpu.memory_space<vmem>>, vector<128x128xf32>
    %c0_5 = arith.constant 0 : index
    %c0_6 = arith.constant 0 : index
    %3 = vector.load %arg3[%c0_5, %c0_6] : memref<1x128xf32, #tpu.memory_space<vmem>>, vector<1x128xf32>
    %c0_7 = arith.constant 0 : index
    %c0_8 = arith.constant 0 : index
    %4 = vector.load %arg4[%c0_7, %c0_8] : memref<1x128xf32, #tpu.memory_space<vmem>>, vector<1x128xf32>
    %cst = arith.constant dense<0.000000e+00> : vector<128x128xf32>
    %5 = tpu.matmul %0, %2, %cst {dimension_numbers = #tpu.dot_dimension_numbers<[1], [0], [0], [1], [0, 0, 1, 1], [], []>} : vector<128x128xf32>, vector<128x128xf32>, vector<128x128xf32> -> vector<128x128xf32>
    %6 = arith.subf %0, %5 : vector<128x128xf32>
    %7 = arith.mulf %6, %6 : vector<128x128xf32>
    %cst_9 = arith.constant dense<0.000000e+00> : vector<128x128xf32>
    %8 = tpu.matmul %7, %2, %cst_9 {dimension_numbers = #tpu.dot_dimension_numbers<[1], [0], [0], [1], [0, 0, 1, 1], [], []>} : vector<128x128xf32>, vector<128x128xf32>, vector<128x128xf32> -> vector<128x128xf32>
    %cst_10 = arith.constant 9.99999974E-6 : f32
    %9 = vector.broadcast %cst_10 : f32 to vector<128x128xf32>
    %10 = arith.addf %8, %9 : vector<128x128xf32>
    %11 = math.rsqrt %10 : vector<128x128xf32>
    %12 = arith.mulf %6, %11 : vector<128x128xf32>
    %13 = vector.broadcast %3 : vector<1x128xf32> to vector<128x128xf32>
    %14 = arith.mulf %12, %13 : vector<128x128xf32>
    %15 = vector.broadcast %4 : vector<1x128xf32> to vector<128x128xf32>
    %16 = arith.addf %14, %15 : vector<128x128xf32>
    %17 = arith.negf %16 : vector<128x128xf32>
    %18 = math.exp %17 : vector<128x128xf32>
    %cst_11 = arith.constant 1.000000e+00 : f32
    %19 = vector.broadcast %cst_11 : f32 to vector<128x128xf32>
    %20 = arith.addf %19, %18 : vector<128x128xf32>
    %21 = arith.divf %19, %20 : vector<128x128xf32>
    %22 = arith.mulf %16, %21 : vector<128x128xf32>
    %c0_12 = arith.constant 0 : index
    %c0_13 = arith.constant 0 : index
    %23 = vector.load %arg5[%c0_12, %c0_13] : memref<128x128xf32, #tpu.memory_space<vmem>>, vector<128x128xf32>
    %cst_14 = arith.constant dense<0.000000e+00> : vector<128x128xf32>
    %24 = tpu.matmul %22, %23, %cst_14 {dimension_numbers = #tpu.dot_dimension_numbers<[1], [0], [0], [1], [0, 0, 1, 1], [], []>} : vector<128x128xf32>, vector<128x128xf32>, vector<128x128xf32> -> vector<128x128xf32>
    %25 = arith.negf %1 : vector<128x128xf32>
    %26 = math.exp %25 : vector<128x128xf32>
    %cst_15 = arith.constant 1.000000e+00 : f32
    %27 = vector.broadcast %cst_15 : f32 to vector<128x128xf32>
    %28 = arith.addf %27, %26 : vector<128x128xf32>
    %29 = arith.divf %27, %28 : vector<128x128xf32>
    %30 = arith.mulf %1, %29 : vector<128x128xf32>
    %c0_16 = arith.constant 0 : index
    %c0_17 = arith.constant 0 : index
    %31 = vector.load %arg6[%c0_16, %c0_17] : memref<128x128xf32, #tpu.memory_space<vmem>>, vector<128x128xf32>
    %cst_18 = arith.constant dense<0.000000e+00> : vector<128x128xf32>
    %32 = tpu.matmul %30, %31, %cst_18 {dimension_numbers = #tpu.dot_dimension_numbers<[1], [0], [0], [1], [0, 0, 1, 1], [], []>} : vector<128x128xf32>, vector<128x128xf32>, vector<128x128xf32> -> vector<128x128xf32>
    %33 = arith.addf %24, %32 : vector<128x128xf32>
    %c0_19 = arith.constant 0 : index
    %c0_20 = arith.constant 0 : index
    %34 = vector.load %arg7[%c0_19, %c0_20] : memref<1x128xf32, #tpu.memory_space<vmem>>, vector<1x128xf32>
    %35 = vector.broadcast %34 : vector<1x128xf32> to vector<128x128xf32>
    %36 = arith.addf %33, %35 : vector<128x128xf32>
    %c0_21 = arith.constant 0 : index
    %c0_22 = arith.constant 0 : index
    %37 = vector.load %arg14[%c0_21, %c0_22] : memref<128x128xf32, #tpu.memory_space<vmem>>, vector<128x128xf32>
    %c0_23 = arith.constant 0 : index
    %c0_24 = arith.constant 0 : index
    %38 = vector.load %arg8[%c0_23, %c0_24] : memref<1x128xf32, #tpu.memory_space<vmem>>, vector<1x128xf32>
    %c0_25 = arith.constant 0 : index
    %c0_26 = arith.constant 0 : index
    %39 = vector.load %arg9[%c0_25, %c0_26] : memref<1x128xf32, #tpu.memory_space<vmem>>, vector<1x128xf32>
    %cst_27 = arith.constant dense<0.000000e+00> : vector<128x128xf32>
    %40 = tpu.matmul %36, %37, %cst_27 {dimension_numbers = #tpu.dot_dimension_numbers<[1], [0], [0], [1], [0, 0, 1, 1], [], []>} : vector<128x128xf32>, vector<128x128xf32>, vector<128x128xf32> -> vector<128x128xf32>
    %41 = arith.subf %36, %40 : vector<128x128xf32>
    %42 = arith.mulf %41, %41 : vector<128x128xf32>
    %cst_28 = arith.constant dense<0.000000e+00> : vector<128x128xf32>
    %43 = tpu.matmul %42, %37, %cst_28 {dimension_numbers = #tpu.dot_dimension_numbers<[1], [0], [0], [1], [0, 0, 1, 1], [], []>} : vector<128x128xf32>, vector<128x128xf32>, vector<128x128xf32> -> vector<128x128xf32>
    %cst_29 = arith.constant 9.99999974E-6 : f32
    %44 = vector.broadcast %cst_29 : f32 to vector<128x128xf32>
    %45 = arith.addf %43, %44 : vector<128x128xf32>
    %46 = math.rsqrt %45 : vector<128x128xf32>
    %47 = arith.mulf %41, %46 : vector<128x128xf32>
    %48 = vector.broadcast %38 : vector<1x128xf32> to vector<128x128xf32>
    %49 = arith.mulf %47, %48 : vector<128x128xf32>
    %50 = vector.broadcast %39 : vector<1x128xf32> to vector<128x128xf32>
    %51 = arith.addf %49, %50 : vector<128x128xf32>
    %52 = arith.negf %51 : vector<128x128xf32>
    %53 = math.exp %52 : vector<128x128xf32>
    %cst_30 = arith.constant 1.000000e+00 : f32
    %54 = vector.broadcast %cst_30 : f32 to vector<128x128xf32>
    %55 = arith.addf %54, %53 : vector<128x128xf32>
    %56 = arith.divf %54, %55 : vector<128x128xf32>
    %57 = arith.mulf %51, %56 : vector<128x128xf32>
    %c0_31 = arith.constant 0 : index
    %c0_32 = arith.constant 0 : index
    %58 = vector.load %arg10[%c0_31, %c0_32] : memref<128x128xf32, #tpu.memory_space<vmem>>, vector<128x128xf32>
    %cst_33 = arith.constant dense<0.000000e+00> : vector<128x128xf32>
    %59 = tpu.matmul %57, %58, %cst_33 {dimension_numbers = #tpu.dot_dimension_numbers<[1], [0], [0], [1], [0, 0, 1, 1], [], []>} : vector<128x128xf32>, vector<128x128xf32>, vector<128x128xf32> -> vector<128x128xf32>
    %c0_34 = arith.constant 0 : index
    %c0_35 = arith.constant 0 : index
    %60 = vector.load %arg11[%c0_34, %c0_35] : memref<128x128xf32, #tpu.memory_space<vmem>>, vector<128x128xf32>
    %cst_36 = arith.constant dense<0.000000e+00> : vector<128x128xf32>
    %61 = tpu.matmul %0, %60, %cst_36 {dimension_numbers = #tpu.dot_dimension_numbers<[1], [0], [0], [1], [0, 0, 1, 1], [], []>} : vector<128x128xf32>, vector<128x128xf32>, vector<128x128xf32> -> vector<128x128xf32>
    %62 = arith.addf %61, %59 : vector<128x128xf32>
    %c0_37 = arith.constant 0 : index
    %c0_38 = arith.constant 0 : index
    %63 = vector.load %arg12[%c0_37, %c0_38] : memref<1x128xf32, #tpu.memory_space<vmem>>, vector<1x128xf32>
    %64 = vector.broadcast %63 : vector<1x128xf32> to vector<128x128xf32>
    %65 = arith.addf %62, %64 : vector<128x128xf32>
    %c0_39 = arith.constant 0 : index
    %c0_40 = arith.constant 0 : index
    %66 = vector.load %arg15[%c0_39, %c0_40] : memref<128x128xf32, #tpu.memory_space<vmem>>, vector<128x128xf32>
    tpu.vector_store %arg15[%c0_39, %c0_40], %65 {strides = array<i32>} : memref<128x128xf32, #tpu.memory_space<vmem>>, vector<128x128xf32>,
    return
  }
  func.func @transform_0(%arg0: i32) -> (i32, i32) {
    %c0_i32 = arith.constant 0 : i32
    %c0_i32_0 = arith.constant 0 : i32
    return %arg0, %c0_i32 : i32, i32
  }
  func.func @transform_1(%arg0: i32) -> (i32, i32) {
    %c0_i32 = arith.constant 0 : i32
    %c0_i32_0 = arith.constant 0 : i32
    return %arg0, %c0_i32 : i32, i32
  }
  func.func @transform_2(%arg0: i32) -> (i32, i32) {
    %c0_i32 = arith.constant 0 : i32
    %c0_i32_0 = arith.constant 0 : i32
    %c0_i32_1 = arith.constant 0 : i32
    return %c0_i32, %c0_i32_0 : i32, i32
  }
  func.func @transform_3(%arg0: i32) -> (i32, i32) {
    %c0_i32 = arith.constant 0 : i32
    %c0_i32_0 = arith.constant 0 : i32
    %c0_i32_1 = arith.constant 0 : i32
    return %c0_i32, %c0_i32_0 : i32, i32
  }
  func.func @transform_4(%arg0: i32) -> (i32, i32) {
    %c0_i32 = arith.constant 0 : i32
    %c0_i32_0 = arith.constant 0 : i32
    %c0_i32_1 = arith.constant 0 : i32
    return %c0_i32, %c0_i32_0 : i32, i32
  }
  func.func @transform_5(%arg0: i32) -> (i32, i32) {
    %c0_i32 = arith.constant 0 : i32
    %c0_i32_0 = arith.constant 0 : i32
    %c0_i32_1 = arith.constant 0 : i32
    return %c0_i32, %c0_i32_0 : i32, i32
  }
  func.func @transform_6(%arg0: i32) -> (i32, i32) {
    %c0_i32 = arith.constant 0 : i32
    %c0_i32_0 = arith.constant 0 : i32
    %c0_i32_1 = arith.constant 0 : i32
    return %c0_i32, %c0_i32_0 : i32, i32
  }
  func.func @transform_7(%arg0: i32) -> (i32, i32) {
    %c0_i32 = arith.constant 0 : i32
    %c0_i32_0 = arith.constant 0 : i32
    %c0_i32_1 = arith.constant 0 : i32
    return %c0_i32, %c0_i32_0 : i32, i32
  }
  func.func @transform_8(%arg0: i32) -> (i32, i32) {
    %c0_i32 = arith.constant 0 : i32
    %c0_i32_0 = arith.constant 0 : i32
    %c0_i32_1 = arith.constant 0 : i32
    return %c0_i32, %c0_i32_0 : i32, i32
  }
  func.func @transform_9(%arg0: i32) -> (i32, i32) {
    %c0_i32 = arith.constant 0 : i32
    %c0_i32_0 = arith.constant 0 : i32
    %c0_i32_1 = arith.constant 0 : i32
    return %c0_i32, %c0_i32_0 : i32, i32
  }
  func.func @transform_10(%arg0: i32) -> (i32, i32) {
    %c0_i32 = arith.constant 0 : i32
    %c0_i32_0 = arith.constant 0 : i32
    %c0_i32_1 = arith.constant 0 : i32
    return %c0_i32, %c0_i32_0 : i32, i32
  }
  func.func @transform_11(%arg0: i32) -> (i32, i32) {
    %c0_i32 = arith.constant 0 : i32
    %c0_i32_0 = arith.constant 0 : i32
    %c0_i32_1 = arith.constant 0 : i32
    return %c0_i32, %c0_i32_0 : i32, i32
  }
  func.func @transform_12(%arg0: i32) -> (i32, i32) {
    %c0_i32 = arith.constant 0 : i32
    %c0_i32_0 = arith.constant 0 : i32
    %c0_i32_1 = arith.constant 0 : i32
    return %c0_i32, %c0_i32_0 : i32, i32
  }
  func.func @transform_13(%arg0: i32) -> (i32, i32) {
    %c0_i32 = arith.constant 0 : i32
    %c0_i32_0 = arith.constant 0 : i32
    %c0_i32_1 = arith.constant 0 : i32
    return %c0_i32, %c0_i32_0 : i32, i32
  }
  func.func @transform_14(%arg0: i32) -> (i32, i32) {
    %c0_i32 = arith.constant 0 : i32
    %c0_i32_0 = arith.constant 0 : i32
    return %arg0, %c0_i32 : i32, i32
  }
}

</mosaic_0001>

<llo_original>
// kernel: tpu_custom_call.1
$region0: #{tpu_custom_call.1}
  #allocation0 [shape = 'u32[]', space=smem, size = 0x4, offset = 0x4, fixed_abs, tag = 'smem constant byte address 0x4 - core index']
  #allocation1 [shape = 'u32[144,128]{1,0:T(1,128)}', space=vmem, size = 0x12000, scoped, tag = 'internal scratch']
  %s0 = inlined_call_operand.hbm [shape: f32[128,128], index: 0, kind: input, shape index: {}]
  %s1 = inlined_call_operand.hbm [shape: f32[128,128], index: 1, kind: input, shape index: {}]
  %s2 = inlined_call_operand.vmem [shape: f32[1,128], index: 2, kind: input, shape index: {}]
  %s3 = inlined_call_operand.vmem [shape: f32[1,128], index: 3, kind: input, shape index: {}]
  %s4 = inlined_call_operand.hbm [shape: f32[128,128], index: 4, kind: input, shape index: {}]
  %s5 = inlined_call_operand.hbm [shape: f32[128,128], index: 5, kind: input, shape index: {}]
  %s6 = inlined_call_operand.vmem [shape: f32[1,128], index: 6, kind: input, shape index: {}]
  %s7 = inlined_call_operand.vmem [shape: f32[1,128], index: 7, kind: input, shape index: {}]
  %s8 = inlined_call_operand.vmem [shape: f32[1,128], index: 8, kind: input, shape index: {}]
  %s9 = inlined_call_operand.hbm [shape: f32[128,128], index: 9, kind: input, shape index: {}]
  %s10 = inlined_call_operand.hbm [shape: f32[128,128], index: 10, kind: input, shape index: {}]
  %s11 = inlined_call_operand.vmem [shape: f32[1,128], index: 11, kind: input, shape index: {}]
  %s12 = inlined_call_operand.hbm [shape: f32[128,128], index: 12, kind: input, shape index: {}]
  %s13 = inlined_call_operand.hbm [shape: f32[128,128], index: 13, kind: input, shape index: {}]
  %s14 = inlined_call_operand.hbm [shape: f32[128,128], index: 14, kind: output, shape index: {}]
  %s15 = sld [smem:[#allocation0]]
  $region98: #{tpu_custom_call.1} parent=0
    _
  %s17 = ssub.s32 1, %s15
  %s18 = scalar_select 0, %s17, %s15
  $region1: #{tpu_custom_call.1} parent=0
    #allocation2 [shape = 'u8[65536]{0}', space=vmem, size = 0x10000, scoped, tag = 'input window, operand 0, single buffered']
    #allocation3 [shape = 's32[1]{0}', space=sflag, size = 0x4, scoped, tag = 'scoped memory for tpu_custom_call.1']
    #allocation4 [shape = 's32[1]{0}', space=sflag, size = 0x4, scoped, tag = 'scoped memory for tpu_custom_call.1']
    #allocation5 [shape = 'u8[65536]{0}', space=vmem, size = 0x10000, scoped, tag = 'input window, operand 1, single buffered']
    #allocation6 [shape = 's32[1]{0}', space=sflag, size = 0x4, scoped, tag = 'scoped memory for tpu_custom_call.1']
    #allocation7 [shape = 'u8[65536]{0}', space=vmem, size = 0x10000, scoped, tag = 'input window, operand 4, single buffered']
    #allocation8 [shape = 'u8[65536]{0}', space=vmem, size = 0x10000, scoped, tag = 'input window, operand 5, single buffered']
    #allocation9 [shape = 's32[1]{0}', space=sflag, size = 0x4, scoped, tag = 'scoped memory for tpu_custom_call.1']
    #allocation10 [shape = 'u8[65536]{0}', space=vmem, size = 0x10000, scoped, tag = 'input window, operand 9, single buffered']
    #allocation11 [shape = 'u8[65536]{0}', space=vmem, size = 0x10000, scoped, tag = 'input window, operand 10, single buffered']
    #allocation12 [shape = 's32[1]{0}', space=sflag, size = 0x4, scoped, tag = 'scoped memory for tpu_custom_call.1']
    #allocation13 [shape = 'u8[65536]{0}', space=vmem, size = 0x10000, scoped, tag = 'input window, operand 12, single buffered']
    #allocation14 [shape = 'u8[65536]{0}', space=vmem, size = 0x10000, scoped, tag = 'input window, operand 13, single buffered']
    #allocation15 [shape = 's32[1]{0}', space=sflag, size = 0x4, scoped, tag = 'scoped memory for tpu_custom_call.1']
    #allocation16 [shape = 'u8[65536]{0}', space=vmem, size = 0x10000, scoped, tag = 'output window, operand 0, single buffered']
    %19 = vsyncpa [#allocation3], 0
    %20 = vsyncpa [#allocation6], 0
    %21 = vsyncpa [#allocation9], 0
    %22 = vsyncpa [#allocation12], 0
    %23 = vsyncpa [#allocation15], 0
    %24 = vsyncpa [#allocation4], 0
    // Predicated region
    $region2: #{tpu_custom_call.1} parent=1 // pred_check
      _
    $region3: #{tpu_custom_call.1} parent=1 // pred_check_branch
      %26 = sbr.rel (0) target = $region5
    $region4: #{tpu_custom_call.1} parent=1 // pred_region
      %s28 = ssub.s32 2048, 2048
      %29 = vsyncadd [#allocation3], %s28
      %s30 = sshll.u32 [#allocation2], 4
      %s31 = int_to_ptr.vmem [resolvable:$true] %s30
      %36 = dma.hbm_to_vmem [thread:$0]  %s0, 2048, %s31, [#allocation3], 128, 128, 8
    $region5: #{tpu_custom_call.1} parent=1 // pred_fallthru
      _
    // Predicated region
    $region6: #{tpu_custom_call.1} parent=1 // pred_check
      _
    $region7: #{tpu_custom_call.1} parent=1 // pred_check_branch
      %38 = sbr.rel (0) target = $region9
    $region8: #{tpu_custom_call.1} parent=1 // pred_region
      %s40 = ssub.s32 2048, 2048
      %41 = vsyncadd [#allocation6], %s40
      %s42 = sshll.u32 [#allocation5], 4
      %s43 = int_to_ptr.vmem [resolvable:$true] %s42
      %48 = dma.hbm_to_vmem [thread:$0]  %s1, 2048, %s43, [#allocation6], 128, 128, 8
    $region9: #{tpu_custom_call.1} parent=1 // pred_fallthru
      _
    // Predicated region
    $region10: #{tpu_custom_call.1} parent=1 // pred_check
      _
    $region11: #{tpu_custom_call.1} parent=1 // pred_check_branch
      %50 = sbr.rel (0) target = $region13
    $region12: #{tpu_custom_call.1} parent=1 // pred_region
      _
    $region13: #{tpu_custom_call.1} parent=1 // pred_fallthru
      _
    // Predicated region
    $region14: #{tpu_custom_call.1} parent=1 // pred_check
      _
    $region15: #{tpu_custom_call.1} parent=1 // pred_check_branch
      %52 = sbr.rel (0) target = $region17
    $region16: #{tpu_custom_call.1} parent=1 // pred_region
      _
    $region17: #{tpu_custom_call.1} parent=1 // pred_fallthru
      _
    // Predicated region
    $region18: #{tpu_custom_call.1} parent=1 // pred_check
      _
    $region19: #{tpu_custom_call.1} parent=1 // pred_check_branch
      %54 = sbr.rel (0) target = $region21
    $region20: #{tpu_custom_call.1} parent=1 // pred_region
      %s56 = ssub.s32 2048, 2048
      %57 = vsyncadd [#allocation6], %s56
      %s58 = sshll.u32 [#allocation7], 4
      %s59 = int_to_ptr.vmem [resolvable:$true] %s58
      %64 = dma.hbm_to_vmem [thread:$0]  %s4, 2048, %s59, [#allocation6], 128, 128, 8
    $region21: #{tpu_custom_call.1} parent=1 // pred_fallthru
      _
    // Predicated region
    $region22: #{tpu_custom_call.1} parent=1 // pred_check
      _
    $region23: #{tpu_custom_call.1} parent=1 // pred_check_branch
      %66 = sbr.rel (0) target = $region25
    $region24: #{tpu_custom_call.1} parent=1 // pred_region
      %s68 = ssub.s32 2048, 2048
      %69 = vsyncadd [#allocation9], %s68
      %s70 = sshll.u32 [#allocation8], 4
      %s71 = int_to_ptr.vmem [resolvable:$true] %s70
      %76 = dma.hbm_to_vmem [thread:$0]  %s5, 2048, %s71, [#allocation9], 128, 128, 8
    $region25: #{tpu_custom_call.1} parent=1 // pred_fallthru
      _
    // Predicated region
    $region26: #{tpu_custom_call.1} parent=1 // pred_check
      _
    $region27: #{tpu_custom_call.1} parent=1 // pred_check_branch
      %78 = sbr.rel (0) target = $region29
    $region28: #{tpu_custom_call.1} parent=1 // pred_region
      _
    $region29: #{tpu_custom_call.1} parent=1 // pred_fallthru
      _
    // Predicated region
    $region30: #{tpu_custom_call.1} parent=1 // pred_check
      _
    $region31: #{tpu_custom_call.1} parent=1 // pred_check_branch
      %80 = sbr.rel (0) target = $region33
    $region32: #{tpu_custom_call.1} parent=1 // pred_region
      _
    $region33: #{tpu_custom_call.1} parent=1 // pred_fallthru
      _
    // Predicated region
    $region34: #{tpu_custom_call.1} parent=1 // pred_check
      _
    $region35: #{tpu_custom_call.1} parent=1 // pred_check_branch
      %82 = sbr.rel (0) target = $region37
    $region36: #{tpu_custom_call.1} parent=1 // pred_region
      _
    $region37: #{tpu_custom_call.1} parent=1 // pred_fallthru
      _
    // Predicated region
    $region38: #{tpu_custom_call.1} parent=1 // pred_check
      _
    $region39: #{tpu_custom_call.1} parent=1 // pred_check_branch
      %84 = sbr.rel (0) target = $region41
    $region40: #{tpu_custom_call.1} parent=1 // pred_region
      %s86 = ssub.s32 2048, 2048
      %87 = vsyncadd [#allocation9], %s86
      %s88 = sshll.u32 [#allocation10], 4
      %s89 = int_to_ptr.vmem [resolvable:$true] %s88
      %94 = dma.hbm_to_vmem [thread:$0]  %s9, 2048, %s89, [#allocation9], 128, 128, 8
    $region41: #{tpu_custom_call.1} parent=1 // pred_fallthru
      _
    // Predicated region
    $region42: #{tpu_custom_call.1} parent=1 // pred_check
      _
    $region43: #{tpu_custom_call.1} parent=1 // pred_check_branch
      %96 = sbr.rel (0) target = $region45
    $region44: #{tpu_custom_call.1} parent=1 // pred_region
      %s98 = ssub.s32 2048, 2048
      %99 = vsyncadd [#allocation12], %s98
      %s100 = sshll.u32 [#allocation11], 4
      %s101 = int_to_ptr.vmem [resolvable:$true] %s100
      %106 = dma.hbm_to_vmem [thread:$0]  %s10, 2048, %s101, [#allocation12], 128, 128, 8
    $region45: #{tpu_custom_call.1} parent=1 // pred_fallthru
      _
    // Predicated region
    $region46: #{tpu_custom_call.1} parent=1 // pred_check
      _
    $region47: #{tpu_custom_call.1} parent=1 // pred_check_branch
      %108 = sbr.rel (0) target = $region49
    $region48: #{tpu_custom_call.1} parent=1 // pred_region
      _
    $region49: #{tpu_custom_call.1} parent=1 // pred_fallthru
      _
    // Predicated region
    $region50: #{tpu_custom_call.1} parent=1 // pred_check
      _
    $region51: #{tpu_custom_call.1} parent=1 // pred_check_branch
      %110 = sbr.rel (0) target = $region53
    $region52: #{tpu_custom_call.1} parent=1 // pred_region
      %s112 = ssub.s32 2048, 2048
      %113 = vsyncadd [#allocation12], %s112
      %s114 = sshll.u32 [#allocation13], 4
      %s115 = int_to_ptr.vmem [resolvable:$true] %s114
      %120 = dma.hbm_to_vmem [thread:$0]  %s12, 2048, %s115, [#allocation12], 128, 128, 8
    $region53: #{tpu_custom_call.1} parent=1 // pred_fallthru
      _
    // Predicated region
    $region54: #{tpu_custom_call.1} parent=1 // pred_check
      _
    $region55: #{tpu_custom_call.1} parent=1 // pred_check_branch
      %122 = sbr.rel (0) target = $region57
    $region56: #{tpu_custom_call.1} parent=1 // pred_region
      %s124 = ssub.s32 2048, 2048
      %125 = vsyncadd [#allocation15], %s124
      %s126 = sshll.u32 [#allocation14], 4
      %s127 = int_to_ptr.vmem [resolvable:$true] %s126
      %132 = dma.hbm_to_vmem [thread:$0]  %s13, 2048, %s127, [#allocation15], 128, 128, 8
    $region57: #{tpu_custom_call.1} parent=1 // pred_fallthru
      _
    // Predicated region
    $region58: #{tpu_custom_call.1} parent=1 // pred_check
      _
    $region59: #{tpu_custom_call.1} parent=1 // pred_check_branch
      %134 = sbr.rel (0) target = $region61
    $region60: #{tpu_custom_call.1} parent=1 // pred_region
      %135 = dma.done [#allocation3], 2048
    $region61: #{tpu_custom_call.1} parent=1 // pred_fallthru
      _
    // Predicated region
    $region62: #{tpu_custom_call.1} parent=1 // pred_check
      _
    $region63: #{tpu_custom_call.1} parent=1 // pred_check_branch
      %137 = sbr.rel (0) target = $region65
    $region64: #{tpu_custom_call.1} parent=1 // pred_region
      %138 = dma.done [#allocation6], 2048
    $region65: #{tpu_custom_call.1} parent=1 // pred_fallthru
      _
    // Predicated region
    $region66: #{tpu_custom_call.1} parent=1 // pred_check
      _
    $region67: #{tpu_custom_call.1} parent=1 // pred_check_branch
      %140 = sbr.rel (0) target = $region69
    $region68: #{tpu_custom_call.1} parent=1 // pred_region
      %141 = dma.done [#allocation6], 2048
    $region69: #{tpu_custom_call.1} parent=1 // pred_fallthru
      _
    // Predicated region
    $region70: #{tpu_custom_call.1} parent=1 // pred_check
      _
    $region71: #{tpu_custom_call.1} parent=1 // pred_check_branch
      %143 = sbr.rel (0) target = $region73
    $region72: #{tpu_custom_call.1} parent=1 // pred_region
      %144 = dma.done [#allocation9], 2048
    $region73: #{tpu_custom_call.1} parent=1 // pred_fallthru
      _
    // Predicated region
    $region74: #{tpu_custom_call.1} parent=1 // pred_check
      _
    $region75: #{tpu_custom_call.1} parent=1 // pred_check_branch
      %146 = sbr.rel (0) target = $region77
    $region76: #{tpu_custom_call.1} parent=1 // pred_region
      %147 = dma.done [#allocation9], 2048
    $region77: #{tpu_custom_call.1} parent=1 // pred_fallthru
      _
    // Predicated region
    $region78: #{tpu_custom_call.1} parent=1 // pred_check
      _
    $region79: #{tpu_custom_call.1} parent=1 // pred_check_branch
      %149 = sbr.rel (0) target = $region81
    $region80: #{tpu_custom_call.1} parent=1 // pred_region
      %150 = dma.done [#allocation12], 2048
    $region81: #{tpu_custom_call.1} parent=1 // pred_fallthru
      _
    // Predicated region
    $region82: #{tpu_custom_call.1} parent=1 // pred_check
      _
    $region83: #{tpu_custom_call.1} parent=1 // pred_check_branch
      %152 = sbr.rel (0) target = $region85
    $region84: #{tpu_custom_call.1} parent=1 // pred_region
      %153 = dma.done [#allocation12], 2048
    $region85: #{tpu_custom_call.1} parent=1 // pred_fallthru
      _
    // Predicated region
    $region86: #{tpu_custom_call.1} parent=1 // pred_check
      _
    $region87: #{tpu_custom_call.1} parent=1 // pred_check_branch
      %155 = sbr.rel (0) target = $region89
    $region88: #{tpu_custom_call.1} parent=1 // pred_region
      %156 = dma.done [#allocation15], 2048
    $region89: #{tpu_custom_call.1} parent=1 // pred_fallthru
      _
    %v157 = vld [vmem:[#allocation2] sm:$0xff]
    %v158 = vld [vmem:[#allocation2 + $0x8] sm:$0xff]
    %v159 = vld [vmem:[#allocation2 + $0x10] sm:$0xff]
    %v160 = vld [vmem:[#allocation2 + $0x18] sm:$0xff]
    %v161 = vld [vmem:[#allocation2 + $0x20] sm:$0xff]
    %v162 = vld [vmem:[#allocation2 + $0x28] sm:$0xff]
    %v163 = vld [vmem:[#allocation2 + $0x30] sm:$0xff]
    %v164 = vld [vmem:[#allocation2 + $0x38] sm:$0xff]
    %v165 = vld [vmem:[#allocation2 + $0x40] sm:$0xff]
    %v166 = vld [vmem:[#allocation2 + $0x48] sm:$0xff]
    %v167 = vld [vmem:[#allocation2 + $0x50] sm:$0xff]
    %v168 = vld [vmem:[#allocation2 + $0x58] sm:$0xff]
    %v169 = vld [vmem:[#allocation2 + $0x60] sm:$0xff]
    %v170 = vld [vmem:[#allocation2 + $0x68] sm:$0xff]
    %v171 = vld [vmem:[#allocation2 + $0x70] sm:$0xff]
    %v172 = vld [vmem:[#allocation2 + $0x78] sm:$0xff]
    %v173 = vld [vmem:[#allocation5] sm:$0xff]
    %v174 = vld [vmem:[#allocation5 + $0x8] sm:$0xff]
    %v175 = vld [vmem:[#allocation5 + $0x10] sm:$0xff]
    %v176 = vld [vmem:[#allocation5 + $0x18] sm:$0xff]
    %v177 = vld [vmem:[#allocation5 + $0x20] sm:$0xff]
    %v178 = vld [vmem:[#allocation5 + $0x28] sm:$0xff]
    %v179 = vld [vmem:[#allocation5 + $0x30] sm:$0xff]
    %v180 = vld [vmem:[#allocation5 + $0x38] sm:$0xff]
    %v181 = vld [vmem:[#allocation5 + $0x40] sm:$0xff]
    %v182 = vld [vmem:[#allocation5 + $0x48] sm:$0xff]
    %v183 = vld [vmem:[#allocation5 + $0x50] sm:$0xff]
    %v184 = vld [vmem:[#allocation5 + $0x58] sm:$0xff]
    %v185 = vld [vmem:[#allocation5 + $0x60] sm:$0xff]
    %v186 = vld [vmem:[#allocation5 + $0x68] sm:$0xff]
    %v187 = vld [vmem:[#allocation5 + $0x70] sm:$0xff]
    %v188 = vld [vmem:[#allocation5 + $0x78] sm:$0xff]
    %v189 = vld [vmem:[#allocation13] sm:$0xff]
    %v190 = vld [vmem:[#allocation13 + $0x8] sm:$0xff]
    %v191 = vld [vmem:[#allocation13 + $0x10] sm:$0xff]
    %v192 = vld [vmem:[#allocation13 + $0x18] sm:$0xff]
    %v193 = vld [vmem:[#allocation13 + $0x20] sm:$0xff]
    %v194 = vld [vmem:[#allocation13 + $0x28] sm:$0xff]
    %v195 = vld [vmem:[#allocation13 + $0x30] sm:$0xff]
    %v196 = vld [vmem:[#allocation13 + $0x38] sm:$0xff]
    %v197 = vld [vmem:[#allocation13 + $0x40] sm:$0xff]
    %v198 = vld [vmem:[#allocation13 + $0x48] sm:$0xff]
    %v199 = vld [vmem:[#allocation13 + $0x50] sm:$0xff]
    %v200 = vld [vmem:[#allocation13 + $0x58] sm:$0xff]
    %v201 = vld [vmem:[#allocation13 + $0x60] sm:$0xff]
    %v202 = vld [vmem:[#allocation13 + $0x68] sm:$0xff]
    %v203 = vld [vmem:[#allocation13 + $0x70] sm:$0xff]
    %v204 = vld [vmem:[#allocation13 + $0x78] sm:$0xff]
    %v205 = vld [vmem:[%s2] sm:$0x1]
    %v206 = vld [vmem:[%s3] sm:$0x1]
    %207 = vmatprep.subr.mxu0 0.0
    %208 = vmatpush1.msra.mxu0 %v189
    %209 = vmatprep.subr.mxu0 0.0
    %210 = vmatpush1.msra.mxu0 %v190
    %211 = vmatprep.subr.mxu0 0.0
    %212 = vmatpush1.msra.mxu0 %v191
    %213 = vmatprep.subr.mxu0 0.0
    %214 = vmatpush1.msra.mxu0 %v192
    %215 = vmatprep.subr.mxu0 0.0
    %216 = vmatpush1.msra.mxu0 %v193
    %217 = vmatprep.subr.mxu0 0.0
    %218 = vmatpush1.msra.mxu0 %v194
    %219 = vmatprep.subr.mxu0 0.0
    %220 = vmatpush1.msra.mxu0 %v195
    %221 = vmatprep.subr.mxu0 0.0
    %222 = vmatpush1.msra.mxu0 %v196
    %223 = vmatprep.subr.mxu0 0.0
    %224 = vmatpush1.msra.mxu0 %v197
    %225 = vmatprep.subr.mxu0 0.0
    %226 = vmatpush1.msra.mxu0 %v198
    %227 = vmatprep.subr.mxu0 0.0
    %228 = vmatpush1.msra.mxu0 %v199
    %229 = vmatprep.subr.mxu0 0.0
    %230 = vmatpush1.msra.mxu0 %v200
    %231 = vmatprep.subr.mxu0 0.0
    %232 = vmatpush1.msra.mxu0 %v201
    %233 = vmatprep.subr.mxu0 0.0
    %234 = vmatpush1.msra.mxu0 %v202
    %235 = vmatprep.subr.mxu0 0.0
    %236 = vmatpush1.msra.mxu0 %v203
    %237 = vmatprep.subr.mxu0 0.0
    %238 = vmatpush1.msra.mxu0 %v204
    %239 = vmatprep.subr.mxu0 0.0
    %240 = vmatpush1.msra.mxu0 0.0
    %241 = vmatprep.subr.mxu0 0.0
    %242 = vmatpush1.msra.mxu0 0.0
    %243 = vmatprep.subr.mxu0 0.0
    %244 = vmatpush1.msra.mxu0 0.0
    %245 = vmatprep.subr.mxu0 0.0
    %246 = vmatpush1.msra.mxu0 0.0
    %247 = vmatprep.subr.mxu0 0.0
    %248 = vmatpush1.msra.mxu0 0.0
    %249 = vmatprep.subr.mxu0 0.0
    %250 = vmatpush1.msra.mxu0 0.0
    %251 = vmatprep.subr.mxu0 0.0
    %252 = vmatpush1.msra.mxu0 0.0
    %253 = vmatprep.subr.mxu0 0.0
    %254 = vmatpush1.msra.mxu0 0.0
    %255 = vmatprep.subr.mxu0 0.0
    %256 = vmatpush1.msra.mxu0 0.0
    %257 = vmatprep.subr.mxu0 0.0
    %258 = vmatpush1.msra.mxu0 0.0
    %259 = vmatprep.subr.mxu0 0.0
    %260 = vmatpush1.msra.mxu0 0.0
    %261 = vmatprep.subr.mxu0 0.0
    %262 = vmatpush1.msra.mxu0 0.0
    %263 = vmatprep.subr.mxu0 0.0
    %264 = vmatpush1.msra.mxu0 0.0
    %265 = vmatprep.subr.mxu0 0.0
    %266 = vmatpush1.msra.mxu0 0.0
    %267 = vmatprep.subr.mxu0 0.0
    %268 = vmatpush1.msra.mxu0 0.0
    %269 = vmatprep.subr.mxu0 0.0
    %270 = vmatpush1.msra.mxu0 0.0
    %271 = vmatprep.mubr.f32.mxu0 0.0
    %272 = vmatmul.mubr.f32.gmra.mrb[0].mxu0 %v157
    %v273 = vpop.f32.mrb[0].mxu0
    %v274 = vadd.f32 0.0, %v273
    %v275 = vpop.f32.mrb[0].mxu0
    %276 = vmatprep.mubr.f32.mxu0 0.0
    %277 = vmatmul.mubr.f32.gmra.mrb[0].mxu0 %v158
    %v278 = vpop.f32.mrb[0].mxu0
    %v279 = vadd.f32 0.0, %v278
    %v280 = vpop.f32.mrb[0].mxu0
    %281 = vmatprep.mubr.f32.mxu0 0.0
    %282 = vmatmul.mubr.f32.gmra.mrb[0].mxu0 %v159
    %v283 = vpop.f32.mrb[0].mxu0
    %v284 = vadd.f32 0.0, %v283
    %v285 = vpop.f32.mrb[0].mxu0
    %286 = vmatprep.mubr.f32.mxu0 0.0
    %287 = vmatmul.mubr.f32.gmra.mrb[0].mxu0 %v160
    %v288 = vpop.f32.mrb[0].mxu0
    %v289 = vadd.f32 0.0, %v288
    %v290 = vpop.f32.mrb[0].mxu0
    %291 = vmatprep.mubr.f32.mxu0 0.0
    %292 = vmatmul.mubr.f32.gmra.mrb[0].mxu0 %v161
    %v293 = vpop.f32.mrb[0].mxu0
    %v294 = vadd.f32 0.0, %v293
    %v295 = vpop.f32.mrb[0].mxu0
    %296 = vmatprep.mubr.f32.mxu0 0.0
    %297 = vmatmul.mubr.f32.gmra.mrb[0].mxu0 %v162
    %v298 = vpop.f32.mrb[0].mxu0
    %v299 = vadd.f32 0.0, %v298
    %v300 = vpop.f32.mrb[0].mxu0
    %301 = vmatprep.mubr.f32.mxu0 0.0
    %302 = vmatmul.mubr.f32.gmra.mrb[0].mxu0 %v163
    %v303 = vpop.f32.mrb[0].mxu0
    %v304 = vadd.f32 0.0, %v303
    %v305 = vpop.f32.mrb[0].mxu0
    %306 = vmatprep.mubr.f32.mxu0 0.0
    %307 = vmatmul.mubr.f32.gmra.mrb[0].mxu0 %v164
    %v308 = vpop.f32.mrb[0].mxu0
    %v309 = vadd.f32 0.0, %v308
    %v310 = vpop.f32.mrb[0].mxu0
    %311 = vmatprep.mubr.f32.mxu0 0.0
    %312 = vmatmul.mubr.f32.gmra.mrb[0].mxu0 %v165
    %v313 = vpop.f32.mrb[0].mxu0
    %v314 = vadd.f32 0.0, %v313
    %v315 = vpop.f32.mrb[0].mxu0
    %316 = vmatprep.mubr.f32.mxu0 0.0
    %317 = vmatmul.mubr.f32.gmra.mrb[0].mxu0 %v166
    %v318 = vpop.f32.mrb[0].mxu0
    %v319 = vadd.f32 0.0, %v318
    %v320 = vpop.f32.mrb[0].mxu0
    %321 = vmatprep.mubr.f32.mxu0 0.0
    %322 = vmatmul.mubr.f32.gmra.mrb[0].mxu0 %v167
    %v323 = vpop.f32.mrb[0].mxu0
    %v324 = vadd.f32 0.0, %v323
    %v325 = vpop.f32.mrb[0].mxu0
    %326 = vmatprep.mubr.f32.mxu0 0.0
    %327 = vmatmul.mubr.f32.gmra.mrb[0].mxu0 %v168
    %v328 = vpop.f32.mrb[0].mxu0
    %v329 = vadd.f32 0.0, %v328
    %v330 = vpop.f32.mrb[0].mxu0
    %331 = vmatprep.mubr.f32.mxu0 0.0
    %332 = vmatmul.mubr.f32.gmra.mrb[0].mxu0 %v169
    %v333 = vpop.f32.mrb[0].mxu0
    %v334 = vadd.f32 0.0, %v333
    %v335 = vpop.f32.mrb[0].mxu0
    %336 = vmatprep.mubr.f32.mxu0 0.0
    %337 = vmatmul.mubr.f32.gmra.mrb[0].mxu0 %v170
    %v338 = vpop.f32.mrb[0].mxu0
    %v339 = vadd.f32 0.0, %v338
    %v340 = vpop.f32.mrb[0].mxu0
    %341 = vmatprep.mubr.f32.mxu0 0.0
    %342 = vmatmul.mubr.f32.gmra.mrb[0].mxu0 %v171
    %v343 = vpop.f32.mrb[0].mxu0
    %v344 = vadd.f32 0.0, %v343
    %v345 = vpop.f32.mrb[0].mxu0
    %346 = vmatprep.mubr.f32.mxu0 0.0
    %347 = vmatmul.mubr.f32.gmra.mrb[0].mxu0 %v172
    %v348 = vpop.f32.mrb[0].mxu0
    %v349 = vadd.f32 0.0, %v348
    %v350 = vpop.f32.mrb[0].mxu0
    %351 = vdwg.mxu0
    %v352 = vsub.f32 %v157, %v274
    %v353 = vsub.f32 %v158, %v279
    %v354 = vsub.f32 %v159, %v284
    %v355 = vsub.f32 %v160, %v289
    %v356 = vsub.f32 %v161, %v294
    %v357 = vsub.f32 %v162, %v299
    %v358 = vsub.f32 %v163, %v304
    %v359 = vsub.f32 %v164, %v309
    %v360 = vsub.f32 %v165, %v314
    %v361 = vsub.f32 %v166, %v319
    %v362 = vsub.f32 %v167, %v324
    %v363 = vsub.f32 %v168, %v329
    %v364 = vsub.f32 %v169, %v334
    %v365 = vsub.f32 %v170, %v339
    %v366 = vsub.f32 %v171, %v344
    %v367 = vsub.f32 %v172, %v349
    %v368 = vmul.f32 %v352, %v352
    %v369 = vmul.f32 %v353, %v353
    %v370 = vmul.f32 %v354, %v354
    %v371 = vmul.f32 %v355, %v355
    %v372 = vmul.f32 %v356, %v356
    %v373 = vmul.f32 %v357, %v357
    %v374 = vmul.f32 %v358, %v358
    %v375 = vmul.f32 %v359, %v359
    %v376 = vmul.f32 %v360, %v360
    %v377 = vmul.f32 %v361, %v361
    %v378 = vmul.f32 %v362, %v362
    %v379 = vmul.f32 %v363, %v363
    %v380 = vmul.f32 %v364, %v364
    %v381 = vmul.f32 %v365, %v365
    %v382 = vmul.f32 %v366, %v366
    %v383 = vmul.f32 %v367, %v367
    %384 = vmatprep.subr.mxu0 0.0
    %385 = vmatpush1.msra.mxu0 %v189
    %386 = vmatprep.subr.mxu0 0.0
    %387 = vmatpush1.msra.mxu0 %v190
    %388 = vmatprep.subr.mxu0 0.0
    %389 = vmatpush1.msra.mxu0 %v191
    %390 = vmatprep.subr.mxu0 0.0
    %391 = vmatpush1.msra.mxu0 %v192
    %392 = vmatprep.subr.mxu0 0.0
    %393 = vmatpush1.msra.mxu0 %v193
    %394 = vmatprep.subr.mxu0 0.0
    %395 = vmatpush1.msra.mxu0 %v194
    %396 = vmatprep.subr.mxu0 0.0
    %397 = vmatpush1.msra.mxu0 %v195
    %398 = vmatprep.subr.mxu0 0.0
    %399 = vmatpush1.msra.mxu0 %v196
    %400 = vmatprep.subr.mxu0 0.0
    %401 = vmatpush1.msra.mxu0 %v197
    %402 = vmatprep.subr.mxu0 0.0
    %403 = vmatpush1.msra.mxu0 %v198
    %404 = vmatprep.subr.mxu0 0.0
    %405 = vmatpush1.msra.mxu0 %v199
    %406 = vmatprep.subr.mxu0 0.0
    %407 = vmatpush1.msra.mxu0 %v200
    %408 = vmatprep.subr.mxu0 0.0
    %409 = vmatpush1.msra.mxu0 %v201
    %410 = vmatprep.subr.mxu0 0.0
    %411 = vmatpush1.msra.mxu0 %v202
    %412 = vmatprep.subr.mxu0 0.0
    %413 = vmatpush1.msra.mxu0 %v203
    %414 = vmatprep.subr.mxu0 0.0
    %415 = vmatpush1.msra.mxu0 %v204
    %416 = vmatprep.subr.mxu0 0.0
    %417 = vmatpush1.msra.mxu0 0.0
    %418 = vmatprep.subr.mxu0 0.0
    %419 = vmatpush1.msra.mxu0 0.0
    %420 = vmatprep.subr.mxu0 0.0
    %421 = vmatpush1.msra.mxu0 0.0
    %422 = vmatprep.subr.mxu0 0.0
    %423 = vmatpush1.msra.mxu0 0.0
    %424 = vmatprep.subr.mxu0 0.0
    %425 = vmatpush1.msra.mxu0 0.0
    %426 = vmatprep.subr.mxu0 0.0
    %427 = vmatpush1.msra.mxu0 0.0
    %428 = vmatprep.subr.mxu0 0.0
    %429 = vmatpush1.msra.mxu0 0.0
    %430 = vmatprep.subr.mxu0 0.0
    %431 = vmatpush1.msra.mxu0 0.0
    %432 = vmatprep.subr.mxu0 0.0
    %433 = vmatpush1.msra.mxu0 0.0
    %434 = vmatprep.subr.mxu0 0.0
    %435 = vmatpush1.msra.mxu0 0.0
    %436 = vmatprep.subr.mxu0 0.0
    %437 = vmatpush1.msra.mxu0 0.0
    %438 = vmatprep.subr.mxu0 0.0
    %439 = vmatpush1.msra.mxu0 0.0
    %440 = vmatprep.subr.mxu0 0.0
    %441 = vmatpush1.msra.mxu0 0.0
    %442 = vmatprep.subr.mxu0 0.0
    %443 = vmatpush1.msra.mxu0 0.0
    %444 = vmatprep.subr.mxu0 0.0
    %445 = vmatpush1.msra.mxu0 0.0
    %446 = vmatprep.subr.mxu0 0.0
    %447 = vmatpush1.msra.mxu0 0.0
    %448 = vmatprep.mubr.f32.mxu0 0.0
    %449 = vmatmul.mubr.f32.gmra.mrb[0].mxu0 %v368
    %v450 = vpop.f32.mrb[0].mxu0
    %v451 = vadd.f32 1e-05, %v450
    %v452 = vpop.f32.mrb[0].mxu0
    %453 = vmatprep.mubr.f32.mxu0 0.0
    %454 = vmatmul.mubr.f32.gmra.mrb[0].mxu0 %v369
    %v455 = vpop.f32.mrb[0].mxu0
    %v456 = vadd.f32 1e-05, %v455
    %v457 = vpop.f32.mrb[0].mxu0
    %458 = vmatprep.mubr.f32.mxu0 0.0
    %459 = vmatmul.mubr.f32.gmra.mrb[0].mxu0 %v370
    %v460 = vpop.f32.mrb[0].mxu0
    %v461 = vadd.f32 1e-05, %v460
    %v462 = vpop.f32.mrb[0].mxu0
    %463 = vmatprep.mubr.f32.mxu0 0.0
    %464 = vmatmul.mubr.f32.gmra.mrb[0].mxu0 %v371
    %v465 = vpop.f32.mrb[0].mxu0
    %v466 = vadd.f32 1e-05, %v465
    %v467 = vpop.f32.mrb[0].mxu0
    %468 = vmatprep.mubr.f32.mxu0 0.0
    %469 = vmatmul.mubr.f32.gmra.mrb[0].mxu0 %v372
    %v470 = vpop.f32.mrb[0].mxu0
    %v471 = vadd.f32 1e-05, %v470
    %v472 = vpop.f32.mrb[0].mxu0
    %473 = vmatprep.mubr.f32.mxu0 0.0
    %474 = vmatmul.mubr.f32.gmra.mrb[0].mxu0 %v373
    %v475 = vpop.f32.mrb[0].mxu0
    %v476 = vadd.f32 1e-05, %v475
    %v477 = vpop.f32.mrb[0].mxu0
    %478 = vmatprep.mubr.f32.mxu0 0.0
    %479 = vmatmul.mubr.f32.gmra.mrb[0].mxu0 %v374
    %v480 = vpop.f32.mrb[0].mxu0
    %v481 = vadd.f32 1e-05, %v480
    %v482 = vpop.f32.mrb[0].mxu0
    %483 = vmatprep.mubr.f32.mxu0 0.0
    %484 = vmatmul.mubr.f32.gmra.mrb[0].mxu0 %v375
    %v485 = vpop.f32.mrb[0].mxu0
    %v486 = vadd.f32 1e-05, %v485
    %v487 = vpop.f32.mrb[0].mxu0
    %488 = vmatprep.mubr.f32.mxu0 0.0
    %489 = vmatmul.mubr.f32.gmra.mrb[0].mxu0 %v376
    %v490 = vpop.f32.mrb[0].mxu0
    %v491 = vadd.f32 1e-05, %v490
    %v492 = vpop.f32.mrb[0].mxu0
    %493 = vmatprep.mubr.f32.mxu0 0.0
    %494 = vmatmul.mubr.f32.gmra.mrb[0].mxu0 %v377
    %v495 = vpop.f32.mrb[0].mxu0
    %v496 = vadd.f32 1e-05, %v495
    %v497 = vpop.f32.mrb[0].mxu0
    %498 = vmatprep.mubr.f32.mxu0 0.0
    %499 = vmatmul.mubr.f32.gmra.mrb[0].mxu0 %v378
    %v500 = vpop.f32.mrb[0].mxu0
    %v501 = vadd.f32 1e-05, %v500
    %v502 = vpop.f32.mrb[0].mxu0
    %503 = vmatprep.mubr.f32.mxu0 0.0
    %504 = vmatmul.mubr.f32.gmra.mrb[0].mxu0 %v379
    %v505 = vpop.f32.mrb[0].mxu0
    %v506 = vadd.f32 1e-05, %v505
    %v507 = vpop.f32.mrb[0].mxu0
    %508 = vmatprep.mubr.f32.mxu0 0.0
    %509 = vmatmul.mubr.f32.gmra.mrb[0].mxu0 %v380
    %v510 = vpop.f32.mrb[0].mxu0
    %v511 = vadd.f32 1e-05, %v510
    %v512 = vpop.f32.mrb[0].mxu0
    %513 = vmatprep.mubr.f32.mxu0 0.0
    %514 = vmatmul.mubr.f32.gmra.mrb[0].mxu0 %v381
    %v515 = vpop.f32.mrb[0].mxu0
    %v516 = vadd.f32 1e-05, %v515
    %v517 = vpop.f32.mrb[0].mxu0
    %518 = vmatprep.mubr.f32.mxu0 0.0
    %519 = vmatmul.mubr.f32.gmra.mrb[0].mxu0 %v382
    %v520 = vpop.f32.mrb[0].mxu0
    %v521 = vadd.f32 1e-05, %v520
    %v522 = vpop.f32.mrb[0].mxu0
    %523 = vmatprep.mubr.f32.mxu0 0.0
    %524 = vmatmul.mubr.f32.gmra.mrb[0].mxu0 %v383
    %v525 = vpop.f32.mrb[0].mxu0
    %v526 = vadd.f32 1e-05, %v525
    %v527 = vpop.f32.mrb[0].mxu0
    %528 = vdwg.mxu0
    %v529 = vrsqrt.pop %v451
    %v530 = vrsqrt.pop %v456
    %v531 = vrsqrt.pop %v461
    %v532 = vrsqrt.pop %v466
    %v533 = vrsqrt.pop %v471
    %v534 = vrsqrt.pop %v476
    %v535 = vrsqrt.pop %v481
    %v536 = vrsqrt.pop %v486
    %v537 = vrsqrt.pop %v491
    %v538 = vrsqrt.pop %v496
    %v539 = vrsqrt.pop %v501
    %v540 = vrsqrt.pop %v506
    %v541 = vrsqrt.pop %v511
    %v542 = vrsqrt.pop %v516
    %v543 = vrsqrt.pop %v521
    %v544 = vrsqrt.pop %v526
    %v545 = vmul.f32 %v352, %v529
    %v546 = vmul.f32 %v353, %v530
    %v547 = vmul.f32 %v354, %v531
    %v548 = vmul.f32 %v355, %v532
    %v549 = vmul.f32 %v356, %v533
    %v550 = vmul.f32 %v357, %v534
    %v551 = vmul.f32 %v358, %v535
    %v552 = vmul.f32 %v359, %v536
    %v553 = vmul.f32 %v360, %v537
    %v554 = vmul.f32 %v361, %v538
    %v555 = vmul.f32 %v362, %v539
    %v556 = vmul.f32 %v363, %v540
    %v557 = vmul.f32 %v364, %v541
    %v558 = vmul.f32 %v365, %v542
    %v559 = vmul.f32 %v366, %v543
    %v560 = vmul.f32 %v367, %v544
    %v562 = vlaneseq
    %v563 = vshrl.u32 %v562, 7
    %v564 = vsub.s32 0, %v563
    %v565 = vrot.slane %v205, %v564
    %v567 = vmul.f32 %v545, %v565
    %v568 = vmul.f32 %v546, %v565
    %v569 = vmul.f32 %v547, %v565
    %v570 = vmul.f32 %v548, %v565
    %v571 = vmul.f32 %v549, %v565
    %v572 = vmul.f32 %v550, %v565
    %v573 = vmul.f32 %v551, %v565
    %v574 = vmul.f32 %v552, %v565
    %v575 = vmul.f32 %v553, %v565
    %v576 = vmul.f32 %v554, %v565
    %v577 = vmul.f32 %v555, %v565
    %v578 = vmul.f32 %v556, %v565
    %v579 = vmul.f32 %v557, %v565
    %v580 = vmul.f32 %v558, %v565
    %v581 = vmul.f32 %v559, %v565
    %v582 = vmul.f32 %v560, %v565
    %v584 = vlaneseq
    %v585 = vshrl.u32 %v584, 7
    %v586 = vsub.s32 0, %v585
    %v587 = vrot.slane %v206, %v586
    %v589 = vadd.f32 %v567, %v587
    %v590 = vadd.f32 %v568, %v587
    %v591 = vadd.f32 %v569, %v587
    %v592 = vadd.f32 %v570, %v587
    %v593 = vadd.f32 %v571, %v587
    %v594 = vadd.f32 %v572, %v587
    %v595 = vadd.f32 %v573, %v587
    %v596 = vadd.f32 %v574, %v587
    %v597 = vadd.f32 %v575, %v587
    %v598 = vadd.f32 %v576, %v587
    %v599 = vadd.f32 %v577, %v587
    %v600 = vadd.f32 %v578, %v587
    %v601 = vadd.f32 %v579, %v587
    %v602 = vadd.f32 %v580, %v587
    %v603 = vadd.f32 %v581, %v587
    %v604 = vadd.f32 %v582, %v587
    %v605 = vxor.u32 %v589, 2147483648
    %v606 = vxor.u32 %v590, 2147483648
    %v607 = vxor.u32 %v591, 2147483648
    %v608 = vxor.u32 %v592, 2147483648
    %v609 = vxor.u32 %v593, 2147483648
    %v610 = vxor.u32 %v594, 2147483648
    %v611 = vxor.u32 %v595, 2147483648
    %v612 = vxor.u32 %v596, 2147483648
    %v613 = vxor.u32 %v597, 2147483648
    %v614 = vxor.u32 %v598, 2147483648
    %v615 = vxor.u32 %v599, 2147483648
    %v616 = vxor.u32 %v600, 2147483648
    %v617 = vxor.u32 %v601, 2147483648
    %v618 = vxor.u32 %v602, 2147483648
    %v619 = vxor.u32 %v603, 2147483648
    %v620 = vxor.u32 %v604, 2147483648
    %v621 = vmul.f32 %v605, 1.442695
    %v622 = vpow.pop %v621
    %v623 = vmul.f32 %v606, 1.442695
    %v624 = vpow.pop %v623
    %v625 = vmul.f32 %v607, 1.442695
    %v626 = vpow.pop %v625
    %v627 = vmul.f32 %v608, 1.442695
    %v628 = vpow.pop %v627
    %v629 = vmul.f32 %v609, 1.442695
    %v630 = vpow.pop %v629
    %v631 = vmul.f32 %v610, 1.442695
    %v632 = vpow.pop %v631
    %v633 = vmul.f32 %v611, 1.442695
    %v634 = vpow.pop %v633
    %v635 = vmul.f32 %v612, 1.442695
    %v636 = vpow.pop %v635
    %v637 = vmul.f32 %v613, 1.442695
    %v638 = vpow.pop %v637
    %v639 = vmul.f32 %v614, 1.442695
    %v640 = vpow.pop %v639
    %v641 = vmul.f32 %v615, 1.442695
    %v642 = vpow.pop %v641
    %v643 = vmul.f32 %v616, 1.442695
    %v644 = vpow.pop %v643
    %v645 = vmul.f32 %v617, 1.442695
    %v646 = vpow.pop %v645
    %v647 = vmul.f32 %v618, 1.442695
    %v648 = vpow.pop %v647
    %v649 = vmul.f32 %v619, 1.442695
    %v650 = vpow.pop %v649
    %v651 = vmul.f32 %v620, 1.442695
    %v652 = vpow.pop %v651
    %v653 = vadd.f32 %v622, 1.0
    %v654 = vadd.f32 %v624, 1.0
    %v655 = vadd.f32 %v626, 1.0
    %v656 = vadd.f32 %v628, 1.0
    %v657 = vadd.f32 %v630, 1.0
    %v658 = vadd.f32 %v632, 1.0
    %v659 = vadd.f32 %v634, 1.0
    %v660 = vadd.f32 %v636, 1.0
    %v661 = vadd.f32 %v638, 1.0
    %v662 = vadd.f32 %v640, 1.0
    %v663 = vadd.f32 %v642, 1.0
    %v664 = vadd.f32 %v644, 1.0
    %v665 = vadd.f32 %v646, 1.0
    %v666 = vadd.f32 %v648, 1.0
    %v667 = vadd.f32 %v650, 1.0
    %v668 = vadd.f32 %v652, 1.0
    %v669 = vrcp.pop %v653
    %v670 = vmul.f32 1.0, %v669
    %v671 = vrcp.pop %v654
    %v672 = vmul.f32 1.0, %v671
    %v673 = vrcp.pop %v655
    %v674 = vmul.f32 1.0, %v673
    %v675 = vrcp.pop %v656
    %v676 = vmul.f32 1.0, %v675
    %v677 = vrcp.pop %v657
    %v678 = vmul.f32 1.0, %v677
    %v679 = vrcp.pop %v658
    %v680 = vmul.f32 1.0, %v679
    %v681 = vrcp.pop %v659
    %v682 = vmul.f32 1.0, %v681
    %v683 = vrcp.pop %v660
    %v684 = vmul.f32 1.0, %v683
    %v685 = vrcp.pop %v661
    %v686 = vmul.f32 1.0, %v685
    %v687 = vrcp.pop %v662
    %v688 = vmul.f32 1.0, %v687
    %v689 = vrcp.pop %v663
    %v690 = vmul.f32 1.0, %v689
    %v691 = vrcp.pop %v664
    %v692 = vmul.f32 1.0, %v691
    %v693 = vrcp.pop %v665
    %v694 = vmul.f32 1.0, %v693
    %v695 = vrcp.pop %v666
    %v696 = vmul.f32 1.0, %v695
    %v697 = vrcp.pop %v667
    %v698 = vmul.f32 1.0, %v697
    %v699 = vrcp.pop %v668
    %v700 = vmul.f32 1.0, %v699
    %v701 = vmul.f32 %v589, %v670
    %v702 = vmul.f32 %v590, %v672
    %v703 = vmul.f32 %v591, %v674
    %v704 = vmul.f32 %v592, %v676
    %v705 = vmul.f32 %v593, %v678
    %v706 = vmul.f32 %v594, %v680
    %v707 = vmul.f32 %v595, %v682
    %v708 = vmul.f32 %v596, %v684
    %v709 = vmul.f32 %v597, %v686
    %v710 = vmul.f32 %v598, %v688
    %v711 = vmul.f32 %v599, %v690
    %v712 = vmul.f32 %v600, %v692
    %v713 = vmul.f32 %v601, %v694
    %v714 = vmul.f32 %v602, %v696
    %v715 = vmul.f32 %v603, %v698
    %v716 = vmul.f32 %v604, %v700
    %v717 = vld [vmem:[#allocation7] sm:$0xff]
    %v718 = vld [vmem:[#allocation7 + $0x8] sm:$0xff]
    %v719 = vld [vmem:[#allocation7 + $0x10] sm:$0xff]
    %v720 = vld [vmem:[#allocation7 + $0x18] sm:$0xff]
    %v721 = vld [vmem:[#allocation7 + $0x20] sm:$0xff]
    %v722 = vld [vmem:[#allocation7 + $0x28] sm:$0xff]
    %v723 = vld [vmem:[#allocation7 + $0x30] sm:$0xff]
    %v724 = vld [vmem:[#allocation7 + $0x38] sm:$0xff]
    %v725 = vld [vmem:[#allocation7 + $0x40] sm:$0xff]
    %v726 = vld [vmem:[#allocation7 + $0x48] sm:$0xff]
    %v727 = vld [vmem:[#allocation7 + $0x50] sm:$0xff]
    %v728 = vld [vmem:[#allocation7 + $0x58] sm:$0xff]
    %v729 = vld [vmem:[#allocation7 + $0x60] sm:$0xff]
    %v730 = vld [vmem:[#allocation7 + $0x68] sm:$0xff]
    %v731 = vld [vmem:[#allocation7 + $0x70] sm:$0xff]
    %v732 = vld [vmem:[#allocation7 + $0x78] sm:$0xff]
    %v733 = vxor.u32 %v173, 2147483648
    %v734 = vxor.u32 %v174, 2147483648
    %v735 = vxor.u32 %v175, 2147483648
    %v736 = vxor.u32 %v176, 2147483648
    %v737 = vxor.u32 %v177, 2147483648
    %v738 = vxor.u32 %v178, 2147483648
    %v739 = vxor.u32 %v179, 2147483648
    %v740 = vxor.u32 %v180, 2147483648
    %v741 = vxor.u32 %v181, 2147483648
    %v742 = vxor.u32 %v182, 2147483648
    %v743 = vxor.u32 %v183, 2147483648
    %v744 = vxor.u32 %v184, 2147483648
    %v745 = vxor.u32 %v185, 2147483648
    %v746 = vxor.u32 %v186, 2147483648
    %v747 = vxor.u32 %v187, 2147483648
    %v748 = vxor.u32 %v188, 2147483648
    %v749 = vmul.f32 %v733, 1.442695
    %v750 = vpow.pop %v749
    %v751 = vmul.f32 %v734, 1.442695
    %v752 = vpow.pop %v751
    %v753 = vmul.f32 %v735, 1.442695
    %v754 = vpow.pop %v753
    %v755 = vmul.f32 %v736, 1.442695
    %v756 = vpow.pop %v755
    %v757 = vmul.f32 %v737, 1.442695
    %v758 = vpow.pop %v757
    %v759 = vmul.f32 %v738, 1.442695
    %v760 = vpow.pop %v759
    %v761 = vmul.f32 %v739, 1.442695
    %v762 = vpow.pop %v761
    %v763 = vmul.f32 %v740, 1.442695
    %v764 = vpow.pop %v763
    %v765 = vmul.f32 %v741, 1.442695
    %v766 = vpow.pop %v765
    %v767 = vmul.f32 %v742, 1.442695
    %v768 = vpow.pop %v767
    %v769 = vmul.f32 %v743, 1.442695
    %v770 = vpow.pop %v769
    %v771 = vmul.f32 %v744, 1.442695
    %v772 = vpow.pop %v771
    %v773 = vmul.f32 %v745, 1.442695
    %v774 = vpow.pop %v773
    %v775 = vmul.f32 %v746, 1.442695
    %v776 = vpow.pop %v775
    %v777 = vmul.f32 %v747, 1.442695
    %v778 = vpow.pop %v777
    %v779 = vmul.f32 %v748, 1.442695
    %v780 = vpow.pop %v779
    %v781 = vadd.f32 %v750, 1.0
    %v782 = vadd.f32 %v752, 1.0
    %v783 = vadd.f32 %v754, 1.0
    %v784 = vadd.f32 %v756, 1.0
    %v785 = vadd.f32 %v758, 1.0
    %v786 = vadd.f32 %v760, 1.0
    %v787 = vadd.f32 %v762, 1.0
    %v788 = vadd.f32 %v764, 1.0
    %v789 = vadd.f32 %v766, 1.0
    %v790 = vadd.f32 %v768, 1.0
    %v791 = vadd.f32 %v770, 1.0
    %v792 = vadd.f32 %v772, 1.0
    %v793 = vadd.f32 %v774, 1.0
    %v794 = vadd.f32 %v776, 1.0
    %v795 = vadd.f32 %v778, 1.0
    %v796 = vadd.f32 %v780, 1.0
    %v797 = vrcp.pop %v781
    %v798 = vmul.f32 1.0, %v797
    %v799 = vrcp.pop %v782
    %v800 = vmul.f32 1.0, %v799
    %v801 = vrcp.pop %v783
    %v802 = vmul.f32 1.0, %v801
    %v803 = vrcp.pop %v784
    %v804 = vmul.f32 1.0, %v803
    %v805 = vrcp.pop %v785
    %v806 = vmul.f32 1.0, %v805
    %v807 = vrcp.pop %v786
    %v808 = vmul.f32 1.0, %v807
    %v809 = vrcp.pop %v787
    %v810 = vmul.f32 1.0, %v809
    %v811 = vrcp.pop %v788
    %v812 = vmul.f32 1.0, %v811
    %v813 = vrcp.pop %v789
    %v814 = vmul.f32 1.0, %v813
    %v815 = vrcp.pop %v790
    %v816 = vmul.f32 1.0, %v815
    %v817 = vrcp.pop %v791
    %v818 = vmul.f32 1.0, %v817
    %v819 = vrcp.pop %v792
    %v820 = vmul.f32 1.0, %v819
    %v821 = vrcp.pop %v793
    %v822 = vmul.f32 1.0, %v821
    %v823 = vrcp.pop %v794
    %v824 = vmul.f32 1.0, %v823
    %v825 = vrcp.pop %v795
    %v826 = vmul.f32 1.0, %v825
    %v827 = vrcp.pop %v796
    %v828 = vmul.f32 1.0, %v827
    %v829 = vmul.f32 %v173, %v798
    %v830 = vmul.f32 %v174, %v800
    %v831 = vmul.f32 %v175, %v802
    %v832 = vmul.f32 %v176, %v804
    %v833 = vmul.f32 %v177, %v806
    %v834 = vmul.f32 %v178, %v808
    %v835 = vmul.f32 %v179, %v810
    %v836 = vmul.f32 %v180, %v812
    %v837 = vmul.f32 %v181, %v814
    %v838 = vmul.f32 %v182, %v816
    %v839 = vmul.f32 %v183, %v818
    %v840 = vmul.f32 %v184, %v820
    %v841 = vmul.f32 %v185, %v822
    %v842 = vmul.f32 %v186, %v824
    %v843 = vmul.f32 %v187, %v826
    %v844 = vmul.f32 %v188, %v828
    %v845 = vld [vmem:[#allocation8] sm:$0xff]
    %v846 = vld [vmem:[#allocation8 + $0x8] sm:$0xff]
    %v847 = vld [vmem:[#allocation8 + $0x10] sm:$0xff]
    %v848 = vld [vmem:[#allocation8 + $0x18] sm:$0xff]
    %v849 = vld [vmem:[#allocation8 + $0x20] sm:$0xff]
    %v850 = vld [vmem:[#allocation8 + $0x28] sm:$0xff]
    %v851 = vld [vmem:[#allocation8 + $0x30] sm:$0xff]
    %v852 = vld [vmem:[#allocation8 + $0x38] sm:$0xff]
    %v853 = vld [vmem:[#allocation8 + $0x40] sm:$0xff]
    %v854 = vld [vmem:[#allocation8 + $0x48] sm:$0xff]
    %v855 = vld [vmem:[#allocation8 + $0x50] sm:$0xff]
    %v856 = vld [vmem:[#allocation8 + $0x58] sm:$0xff]
    %v857 = vld [vmem:[#allocation8 + $0x60] sm:$0xff]
    %v858 = vld [vmem:[#allocation8 + $0x68] sm:$0xff]
    %v859 = vld [vmem:[#allocation8 + $0x70] sm:$0xff]
    %v860 = vld [vmem:[#allocation8 + $0x78] sm:$0xff]
    %861 = vmatprep.subr.mxu0 0.0
    %862 = vmatpush1.msra.mxu0 %v845
    %863 = vmatprep.subr.mxu0 0.0
    %864 = vmatpush1.msra.mxu0 %v846
    %865 = vmatprep.subr.mxu0 0.0
    %866 = vmatpush1.msra.mxu0 %v847
    %867 = vmatprep.subr.mxu0 0.0
    %868 = vmatpush1.msra.mxu0 %v848
    %869 = vmatprep.subr.mxu0 0.0
    %870 = vmatpush1.msra.mxu0 %v849
    %871 = vmatprep.subr.mxu0 0.0
    %872 = vmatpush1.msra.mxu0 %v850
    %873 = vmatprep.subr.mxu0 0.0
    %874 = vmatpush1.msra.mxu0 %v851
    %875 = vmatprep.subr.mxu0 0.0
    %876 = vmatpush1.msra.mxu0 %v852
    %877 = vmatprep.subr.mxu0 0.0
    %878 = vmatpush1.msra.mxu0 %v853
    %879 = vmatprep.subr.mxu0 0.0
    %880 = vmatpush1.msra.mxu0 %v854
    %881 = vmatprep.subr.mxu0 0.0
    %882 = vmatpush1.msra.mxu0 %v855
    %883 = vmatprep.subr.mxu0 0.0
    %884 = vmatpush1.msra.mxu0 %v856
    %885 = vmatprep.subr.mxu0 0.0
    %886 = vmatpush1.msra.mxu0 %v857
    %887 = vmatprep.subr.mxu0 0.0
    %888 = vmatpush1.msra.mxu0 %v858
    %889 = vmatprep.subr.mxu0 0.0
    %890 = vmatpush1.msra.mxu0 %v859
    %891 = vmatprep.subr.mxu0 0.0
    %892 = vmatpush1.msra.mxu0 %v860
    %893 = vmatprep.subr.mxu0 0.0
    %894 = vmatpush1.msra.mxu0 0.0
    %895 = vmatprep.subr.mxu0 0.0
    %896 = vmatpush1.msra.mxu0 0.0
    %897 = vmatprep.subr.mxu0 0.0
    %898 = vmatpush1.msra.mxu0 0.0
    %899 = vmatprep.subr.mxu0 0.0
    %900 = vmatpush1.msra.mxu0 0.0
    %901 = vmatprep.subr.mxu0 0.0
    %902 = vmatpush1.msra.mxu0 0.0
    %903 = vmatprep.subr.mxu0 0.0
    %904 = vmatpush1.msra.mxu0 0.0
    %905 = vmatprep.subr.mxu0 0.0
    %906 = vmatpush1.msra.mxu0 0.0
    %907 = vmatprep.subr.mxu0 0.0
    %908 = vmatpush1.msra.mxu0 0.0
    %909 = vmatprep.subr.mxu0 0.0
    %910 = vmatpush1.msra.mxu0 0.0
    %911 = vmatprep.subr.mxu0 0.0
    %912 = vmatpush1.msra.mxu0 0.0
    %913 = vmatprep.subr.mxu0 0.0
    %914 = vmatpush1.msra.mxu0 0.0
    %915 = vmatprep.subr.mxu0 0.0
    %916 = vmatpush1.msra.mxu0 0.0
    %917 = vmatprep.subr.mxu0 0.0
    %918 = vmatpush1.msra.mxu0 0.0
    %919 = vmatprep.subr.mxu0 0.0
    %920 = vmatpush1.msra.mxu0 0.0
    %921 = vmatprep.subr.mxu0 0.0
    %922 = vmatpush1.msra.mxu0 0.0
    %923 = vmatprep.subr.mxu0 0.0
    %924 = vmatpush1.msra.mxu0 0.0
    %925 = vmatprep.mubr.f32.mxu0 0.0
    %926 = vmatmul.mubr.f32.gmra.mrb[0].mxu0 %v829
    %v927 = vpop.f32.mrb[0].mxu0
    %v928 = vadd.f32 0.0, %v927
    %v929 = vpop.f32.mrb[0].mxu0
    %930 = vmatprep.mubr.f32.mxu0 0.0
    %931 = vmatmul.mubr.f32.gmra.mrb[0].mxu0 %v830
    %v932 = vpop.f32.mrb[0].mxu0
    %v933 = vadd.f32 0.0, %v932
    %v934 = vpop.f32.mrb[0].mxu0
    %935 = vmatprep.mubr.f32.mxu0 0.0
    %936 = vmatmul.mubr.f32.gmra.mrb[0].mxu0 %v831
    %v937 = vpop.f32.mrb[0].mxu0
    %v938 = vadd.f32 0.0, %v937
    %v939 = vpop.f32.mrb[0].mxu0
    %940 = vmatprep.mubr.f32.mxu0 0.0
    %941 = vmatmul.mubr.f32.gmra.mrb[0].mxu0 %v832
    %v942 = vpop.f32.mrb[0].mxu0
    %v943 = vadd.f32 0.0, %v942
    %v944 = vpop.f32.mrb[0].mxu0
    %945 = vmatprep.mubr.f32.mxu0 0.0
    %946 = vmatmul.mubr.f32.gmra.mrb[0].mxu0 %v833
    %v947 = vpop.f32.mrb[0].mxu0
    %v948 = vadd.f32 0.0, %v947
    %v949 = vpop.f32.mrb[0].mxu0
    %950 = vmatprep.mubr.f32.mxu0 0.0
    %951 = vmatmul.mubr.f32.gmra.mrb[0].mxu0 %v834
    %v952 = vpop.f32.mrb[0].mxu0
    %v953 = vadd.f32 0.0, %v952
    %v954 = vpop.f32.mrb[0].mxu0
    %955 = vmatprep.mubr.f32.mxu0 0.0
    %956 = vmatmul.mubr.f32.gmra.mrb[0].mxu0 %v835
    %v957 = vpop.f32.mrb[0].mxu0
    %v958 = vadd.f32 0.0, %v957
    %v959 = vpop.f32.mrb[0].mxu0
    %960 = vmatprep.mubr.f32.mxu0 0.0
    %961 = vmatmul.mubr.f32.gmra.mrb[0].mxu0 %v836
    %v962 = vpop.f32.mrb[0].mxu0
    %v963 = vadd.f32 0.0, %v962
    %v964 = vpop.f32.mrb[0].mxu0
    %965 = vmatprep.mubr.f32.mxu0 0.0
    %966 = vmatmul.mubr.f32.gmra.mrb[0].mxu0 %v837
    %v967 = vpop.f32.mrb[0].mxu0
    %v968 = vadd.f32 0.0, %v967
    %v969 = vpop.f32.mrb[0].mxu0
    %970 = vmatprep.mubr.f32.mxu0 0.0
    %971 = vmatmul.mubr.f32.gmra.mrb[0].mxu0 %v838
    %v972 = vpop.f32.mrb[0].mxu0
    %v973 = vadd.f32 0.0, %v972
    %v974 = vpop.f32.mrb[0].mxu0
    %975 = vmatprep.mubr.f32.mxu0 0.0
    %976 = vmatmul.mubr.f32.gmra.mrb[0].mxu0 %v839
    %v977 = vpop.f32.mrb[0].mxu0
    %v978 = vadd.f32 0.0, %v977
    %v979 = vpop.f32.mrb[0].mxu0
    %980 = vmatprep.mubr.f32.mxu0 0.0
    %981 = vmatmul.mubr.f32.gmra.mrb[0].mxu0 %v840
    %v982 = vpop.f32.mrb[0].mxu0
    %v983 = vadd.f32 0.0, %v982
    %v984 = vpop.f32.mrb[0].mxu0
    %985 = vmatprep.mubr.f32.mxu0 0.0
    %986 = vmatmul.mubr.f32.gmra.mrb[0].mxu0 %v841
    %v987 = vpop.f32.mrb[0].mxu0
    %v988 = vadd.f32 0.0, %v987
    %v989 = vpop.f32.mrb[0].mxu0
    %990 = vmatprep.mubr.f32.mxu0 0.0
    %991 = vmatmul.mubr.f32.gmra.mrb[0].mxu0 %v842
    %v992 = vpop.f32.mrb[0].mxu0
    %v993 = vadd.f32 0.0, %v992
    %v994 = vpop.f32.mrb[0].mxu0
    %995 = vmatprep.mubr.f32.mxu0 0.0
    %996 = vmatmul.mubr.f32.gmra.mrb[0].mxu0 %v843
    %v997 = vpop.f32.mrb[0].mxu0
    %v998 = vadd.f32 0.0, %v997
    %v999 = vpop.f32.mrb[0].mxu0
    %1000 = vmatprep.mubr.f32.mxu0 0.0
    %1001 = vmatmul.mubr.f32.gmra.mrb[0].mxu0 %v844
    %v1002 = vpop.f32.mrb[0].mxu0
    %v1003 = vadd.f32 0.0, %v1002
    %v1004 = vpop.f32.mrb[0].mxu0
    %1005 = vdwg.mxu0
    %1006 = vmatprep.subr.mxu0 0.0
    %1007 = vmatpush1.msra.mxu0 %v717
    %1008 = vmatprep.subr.mxu0 0.0
    %1009 = vmatpush1.msra.mxu0 %v718
    %1010 = vmatprep.subr.mxu0 0.0
    %1011 = vmatpush1.msra.mxu0 %v719
    %1012 = vmatprep.subr.mxu0 0.0
    %1013 = vmatpush1.msra.mxu0 %v720
    %1014 = vmatprep.subr.mxu0 0.0
    %1015 = vmatpush1.msra.mxu0 %v721
    %1016 = vmatprep.subr.mxu0 0.0
    %1017 = vmatpush1.msra.mxu0 %v722
    %1018 = vmatprep.subr.mxu0 0.0
    %1019 = vmatpush1.msra.mxu0 %v723
    %1020 = vmatprep.subr.mxu0 0.0
    %1021 = vmatpush1.msra.mxu0 %v724
    %1022 = vmatprep.subr.mxu0 0.0
    %1023 = vmatpush1.msra.mxu0 %v725
    %1024 = vmatprep.subr.mxu0 0.0
    %1025 = vmatpush1.msra.mxu0 %v726
    %1026 = vmatprep.subr.mxu0 0.0
    %1027 = vmatpush1.msra.mxu0 %v727
    %1028 = vmatprep.subr.mxu0 0.0
    %1029 = vmatpush1.msra.mxu0 %v728
    %1030 = vmatprep.subr.mxu0 0.0
    %1031 = vmatpush1.msra.mxu0 %v729
    %1032 = vmatprep.subr.mxu0 0.0
    %1033 = vmatpush1.msra.mxu0 %v730
    %1034 = vmatprep.subr.mxu0 0.0
    %1035 = vmatpush1.msra.mxu0 %v731
    %1036 = vmatprep.subr.mxu0 0.0
    %1037 = vmatpush1.msra.mxu0 %v732
    %1038 = vmatprep.subr.mxu0 0.0
    %1039 = vmatpush1.msra.mxu0 0.0
    %1040 = vmatprep.subr.mxu0 0.0
    %1041 = vmatpush1.msra.mxu0 0.0
    %1042 = vmatprep.subr.mxu0 0.0
    %1043 = vmatpush1.msra.mxu0 0.0
    %1044 = vmatprep.subr.mxu0 0.0
    %1045 = vmatpush1.msra.mxu0 0.0
    %1046 = vmatprep.subr.mxu0 0.0
    %1047 = vmatpush1.msra.mxu0 0.0
    %1048 = vmatprep.subr.mxu0 0.0
    %1049 = vmatpush1.msra.mxu0 0.0
    %1050 = vmatprep.subr.mxu0 0.0
    %1051 = vmatpush1.msra.mxu0 0.0
    %1052 = vmatprep.subr.mxu0 0.0
    %1053 = vmatpush1.msra.mxu0 0.0
    %1054 = vmatprep.subr.mxu0 0.0
    %1055 = vmatpush1.msra.mxu0 0.0
    %1056 = vmatprep.subr.mxu0 0.0
    %1057 = vmatpush1.msra.mxu0 0.0
    %1058 = vmatprep.subr.mxu0 0.0
    %1059 = vmatpush1.msra.mxu0 0.0
    %1060 = vmatprep.subr.mxu0 0.0
    %1061 = vmatpush1.msra.mxu0 0.0
    %1062 = vmatprep.subr.mxu0 0.0
    %1063 = vmatpush1.msra.mxu0 0.0
    %1064 = vmatprep.subr.mxu0 0.0
    %1065 = vmatpush1.msra.mxu0 0.0
    %1066 = vmatprep.subr.mxu0 0.0
    %1067 = vmatpush1.msra.mxu0 0.0
    %1068 = vmatprep.subr.mxu0 0.0
    %1069 = vmatpush1.msra.mxu0 0.0
    %1070 = vmatprep.mubr.f32.mxu0 0.0
    %1071 = vmatmul.mubr.f32.gmra.mrb[0].mxu0 %v701
    %v1072 = vpop.f32.mrb[0].mxu0
    %v1073 = vadd.f32 %v928, %v1072
    %v1074 = vpop.f32.mrb[0].mxu0
    %1075 = vmatprep.mubr.f32.mxu0 0.0
    %1076 = vmatmul.mubr.f32.gmra.mrb[0].mxu0 %v702
    %v1077 = vpop.f32.mrb[0].mxu0
    %v1078 = vadd.f32 %v933, %v1077
    %v1079 = vpop.f32.mrb[0].mxu0
    %1080 = vmatprep.mubr.f32.mxu0 0.0
    %1081 = vmatmul.mubr.f32.gmra.mrb[0].mxu0 %v703
    %v1082 = vpop.f32.mrb[0].mxu0
    %v1083 = vadd.f32 %v938, %v1082
    %v1084 = vpop.f32.mrb[0].mxu0
    %1085 = vmatprep.mubr.f32.mxu0 0.0
    %1086 = vmatmul.mubr.f32.gmra.mrb[0].mxu0 %v704
    %v1087 = vpop.f32.mrb[0].mxu0
    %v1088 = vadd.f32 %v943, %v1087
    %v1089 = vpop.f32.mrb[0].mxu0
    %1090 = vmatprep.mubr.f32.mxu0 0.0
    %1091 = vmatmul.mubr.f32.gmra.mrb[0].mxu0 %v705
    %v1092 = vpop.f32.mrb[0].mxu0
    %v1093 = vadd.f32 %v948, %v1092
    %v1094 = vpop.f32.mrb[0].mxu0
    %1095 = vmatprep.mubr.f32.mxu0 0.0
    %1096 = vmatmul.mubr.f32.gmra.mrb[0].mxu0 %v706
    %v1097 = vpop.f32.mrb[0].mxu0
    %v1098 = vadd.f32 %v953, %v1097
    %v1099 = vpop.f32.mrb[0].mxu0
    %1100 = vmatprep.mubr.f32.mxu0 0.0
    %1101 = vmatmul.mubr.f32.gmra.mrb[0].mxu0 %v707
    %v1102 = vpop.f32.mrb[0].mxu0
    %v1103 = vadd.f32 %v958, %v1102
    %v1104 = vpop.f32.mrb[0].mxu0
    %1105 = vmatprep.mubr.f32.mxu0 0.0
    %1106 = vmatmul.mubr.f32.gmra.mrb[0].mxu0 %v708
    %v1107 = vpop.f32.mrb[0].mxu0
    %v1108 = vadd.f32 %v963, %v1107
    %v1109 = vpop.f32.mrb[0].mxu0
    %1110 = vmatprep.mubr.f32.mxu0 0.0
    %1111 = vmatmul.mubr.f32.gmra.mrb[0].mxu0 %v709
    %v1112 = vpop.f32.mrb[0].mxu0
    %v1113 = vadd.f32 %v968, %v1112
    %v1114 = vpop.f32.mrb[0].mxu0
    %1115 = vmatprep.mubr.f32.mxu0 0.0
    %1116 = vmatmul.mubr.f32.gmra.mrb[0].mxu0 %v710
    %v1117 = vpop.f32.mrb[0].mxu0
    %v1118 = vadd.f32 %v973, %v1117
    %v1119 = vpop.f32.mrb[0].mxu0
    %1120 = vmatprep.mubr.f32.mxu0 0.0
    %1121 = vmatmul.mubr.f32.gmra.mrb[0].mxu0 %v711
    %v1122 = vpop.f32.mrb[0].mxu0
    %v1123 = vadd.f32 %v978, %v1122
    %v1124 = vpop.f32.mrb[0].mxu0
    %1125 = vmatprep.mubr.f32.mxu0 0.0
    %1126 = vmatmul.mubr.f32.gmra.mrb[0].mxu0 %v712
    %v1127 = vpop.f32.mrb[0].mxu0
    %v1128 = vadd.f32 %v983, %v1127
    %v1129 = vpop.f32.mrb[0].mxu0
    %1130 = vmatprep.mubr.f32.mxu0 0.0
    %1131 = vmatmul.mubr.f32.gmra.mrb[0].mxu0 %v713
    %v1132 = vpop.f32.mrb[0].mxu0
    %v1133 = vadd.f32 %v988, %v1132
    %v1134 = vpop.f32.mrb[0].mxu0
    %1135 = vmatprep.mubr.f32.mxu0 0.0
    %1136 = vmatmul.mubr.f32.gmra.mrb[0].mxu0 %v714
    %v1137 = vpop.f32.mrb[0].mxu0
    %v1138 = vadd.f32 %v993, %v1137
    %v1139 = vpop.f32.mrb[0].mxu0
    %1140 = vmatprep.mubr.f32.mxu0 0.0
    %1141 = vmatmul.mubr.f32.gmra.mrb[0].mxu0 %v715
    %v1142 = vpop.f32.mrb[0].mxu0
    %v1143 = vadd.f32 %v998, %v1142
    %v1144 = vpop.f32.mrb[0].mxu0
    %1145 = vmatprep.mubr.f32.mxu0 0.0
    %1146 = vmatmul.mubr.f32.gmra.mrb[0].mxu0 %v716
    %v1147 = vpop.f32.mrb[0].mxu0
    %v1148 = vadd.f32 %v1003, %v1147
    %v1149 = vpop.f32.mrb[0].mxu0
    %1150 = vdwg.mxu0
    %v1151 = vld [vmem:[%s6] sm:$0x1]
    %v1153 = vlaneseq
    %v1154 = vshrl.u32 %v1153, 7
    %v1155 = vsub.s32 0, %v1154
    %v1156 = vrot.slane %v1151, %v1155
    %v1158 = vadd.f32 %v1073, %v1156
    %v1159 = vadd.f32 %v1078, %v1156
    %v1160 = vadd.f32 %v1083, %v1156
    %v1161 = vadd.f32 %v1088, %v1156
    %v1162 = vadd.f32 %v1093, %v1156
    %v1163 = vadd.f32 %v1098, %v1156
    %v1164 = vadd.f32 %v1103, %v1156
    %v1165 = vadd.f32 %v1108, %v1156
    %v1166 = vadd.f32 %v1113, %v1156
    %v1167 = vadd.f32 %v1118, %v1156
    %v1168 = vadd.f32 %v1123, %v1156
    %v1169 = vadd.f32 %v1128, %v1156
    %v1170 = vadd.f32 %v1133, %v1156
    %v1171 = vadd.f32 %v1138, %v1156
    %v1172 = vadd.f32 %v1143, %v1156
    %v1173 = vadd.f32 %v1148, %v1156
    %v1174 = vld [vmem:[#allocation14] sm:$0xff]
    %v1175 = vld [vmem:[#allocation14 + $0x8] sm:$0xff]
    %v1176 = vld [vmem:[#allocation14 + $0x10] sm:$0xff]
    %v1177 = vld [vmem:[#allocation14 + $0x18] sm:$0xff]
    %v1178 = vld [vmem:[#allocation14 + $0x20] sm:$0xff]
    %v1179 = vld [vmem:[#allocation14 + $0x28] sm:$0xff]
    %v1180 = vld [vmem:[#allocation14 + $0x30] sm:$0xff]
    %v1181 = vld [vmem:[#allocation14 + $0x38] sm:$0xff]
    %v1182 = vld [vmem:[#allocation14 + $0x40] sm:$0xff]
    %v1183 = vld [vmem:[#allocation14 + $0x48] sm:$0xff]
    %v1184 = vld [vmem:[#allocation14 + $0x50] sm:$0xff]
    %v1185 = vld [vmem:[#allocation14 + $0x58] sm:$0xff]
    %v1186 = vld [vmem:[#allocation14 + $0x60] sm:$0xff]
    %v1187 = vld [vmem:[#allocation14 + $0x68] sm:$0xff]
    %v1188 = vld [vmem:[#allocation14 + $0x70] sm:$0xff]
    %v1189 = vld [vmem:[#allocation14 + $0x78] sm:$0xff]
    %v1190 = vld [vmem:[%s7] sm:$0x1]
    %v1191 = vld [vmem:[%s8] sm:$0x1]
    %1192 = vmatprep.subr.mxu0 0.0
    %1193 = vmatpush1.msra.mxu0 %v1174
    %1194 = vmatprep.subr.mxu0 0.0
    %1195 = vmatpush1.msra.mxu0 %v1175
    %1196 = vmatprep.subr.mxu0 0.0
    %1197 = vmatpush1.msra.mxu0 %v1176
    %1198 = vmatprep.subr.mxu0 0.0
    %1199 = vmatpush1.msra.mxu0 %v1177
    %1200 = vmatprep.subr.mxu0 0.0
    %1201 = vmatpush1.msra.mxu0 %v1178
    %1202 = vmatprep.subr.mxu0 0.0
    %1203 = vmatpush1.msra.mxu0 %v1179
    %1204 = vmatprep.subr.mxu0 0.0
    %1205 = vmatpush1.msra.mxu0 %v1180
    %1206 = vmatprep.subr.mxu0 0.0
    %1207 = vmatpush1.msra.mxu0 %v1181
    %1208 = vmatprep.subr.mxu0 0.0
    %1209 = vmatpush1.msra.mxu0 %v1182
    %1210 = vmatprep.subr.mxu0 0.0
    %1211 = vmatpush1.msra.mxu0 %v1183
    %1212 = vmatprep.subr.mxu0 0.0
    %1213 = vmatpush1.msra.mxu0 %v1184
    %1214 = vmatprep.subr.mxu0 0.0
    %1215 = vmatpush1.msra.mxu0 %v1185
    %1216 = vmatprep.subr.mxu0 0.0
    %1217 = vmatpush1.msra.mxu0 %v1186
    %1218 = vmatprep.subr.mxu0 0.0
    %1219 = vmatpush1.msra.mxu0 %v1187
    %1220 = vmatprep.subr.mxu0 0.0
    %1221 = vmatpush1.msra.mxu0 %v1188
    %1222 = vmatprep.subr.mxu0 0.0
    %1223 = vmatpush1.msra.mxu0 %v1189
    %1224 = vmatprep.subr.mxu0 0.0
    %1225 = vmatpush1.msra.mxu0 0.0
    %1226 = vmatprep.subr.mxu0 0.0
    %1227 = vmatpush1.msra.mxu0 0.0
    %1228 = vmatprep.subr.mxu0 0.0
    %1229 = vmatpush1.msra.mxu0 0.0
    %1230 = vmatprep.subr.mxu0 0.0
    %1231 = vmatpush1.msra.mxu0 0.0
    %1232 = vmatprep.subr.mxu0 0.0
    %1233 = vmatpush1.msra.mxu0 0.0
    %1234 = vmatprep.subr.mxu0 0.0
    %1235 = vmatpush1.msra.mxu0 0.0
    %1236 = vmatprep.subr.mxu0 0.0
    %1237 = vmatpush1.msra.mxu0 0.0
    %1238 = vmatprep.subr.mxu0 0.0
    %1239 = vmatpush1.msra.mxu0 0.0
    %1240 = vmatprep.subr.mxu0 0.0
    %1241 = vmatpush1.msra.mxu0 0.0
    %1242 = vmatprep.subr.mxu0 0.0
    %1243 = vmatpush1.msra.mxu0 0.0
    %1244 = vmatprep.subr.mxu0 0.0
    %1245 = vmatpush1.msra.mxu0 0.0
    %1246 = vmatprep.subr.mxu0 0.0
    %1247 = vmatpush1.msra.mxu0 0.0
    %1248 = vmatprep.subr.mxu0 0.0
    %1249 = vmatpush1.msra.mxu0 0.0
    %1250 = vmatprep.subr.mxu0 0.0
    %1251 = vmatpush1.msra.mxu0 0.0
    %1252 = vmatprep.subr.mxu0 0.0
    %1253 = vmatpush1.msra.mxu0 0.0
    %1254 = vmatprep.subr.mxu0 0.0
    %1255 = vmatpush1.msra.mxu0 0.0
    %1256 = vmatprep.mubr.f32.mxu0 0.0
    %1257 = vmatmul.mubr.f32.gmra.mrb[0].mxu0 %v1158
    %v1258 = vpop.f32.mrb[0].mxu0
    %v1259 = vadd.f32 0.0, %v1258
    %v1260 = vpop.f32.mrb[0].mxu0
    %1261 = vmatprep.mubr.f32.mxu0 0.0
    %1262 = vmatmul.mubr.f32.gmra.mrb[0].mxu0 %v1159
    %v1263 = vpop.f32.mrb[0].mxu0
    %v1264 = vadd.f32 0.0, %v1263
    %v1265 = vpop.f32.mrb[0].mxu0
    %1266 = vmatprep.mubr.f32.mxu0 0.0
    %1267 = vmatmul.mubr.f32.gmra.mrb[0].mxu0 %v1160
    %v1268 = vpop.f32.mrb[0].mxu0
    %v1269 = vadd.f32 0.0, %v1268
    %v1270 = vpop.f32.mrb[0].mxu0
    %1271 = vmatprep.mubr.f32.mxu0 0.0
    %1272 = vmatmul.mubr.f32.gmra.mrb[0].mxu0 %v1161
    %v1273 = vpop.f32.mrb[0].mxu0
    %v1274 = vadd.f32 0.0, %v1273
    %v1275 = vpop.f32.mrb[0].mxu0
    %1276 = vmatprep.mubr.f32.mxu0 0.0
    %1277 = vmatmul.mubr.f32.gmra.mrb[0].mxu0 %v1162
    %v1278 = vpop.f32.mrb[0].mxu0
    %v1279 = vadd.f32 0.0, %v1278
    %v1280 = vpop.f32.mrb[0].mxu0
    %1281 = vmatprep.mubr.f32.mxu0 0.0
    %1282 = vmatmul.mubr.f32.gmra.mrb[0].mxu0 %v1163
    %v1283 = vpop.f32.mrb[0].mxu0
    %v1284 = vadd.f32 0.0, %v1283
    %v1285 = vpop.f32.mrb[0].mxu0
    %1286 = vmatprep.mubr.f32.mxu0 0.0
    %1287 = vmatmul.mubr.f32.gmra.mrb[0].mxu0 %v1164
    %v1288 = vpop.f32.mrb[0].mxu0
    %v1289 = vadd.f32 0.0, %v1288
    %v1290 = vpop.f32.mrb[0].mxu0
    %1291 = vmatprep.mubr.f32.mxu0 0.0
    %1292 = vmatmul.mubr.f32.gmra.mrb[0].mxu0 %v1165
    %v1293 = vpop.f32.mrb[0].mxu0
    %v1294 = vadd.f32 0.0, %v1293
    %v1295 = vpop.f32.mrb[0].mxu0
    %1296 = vmatprep.mubr.f32.mxu0 0.0
    %1297 = vmatmul.mubr.f32.gmra.mrb[0].mxu0 %v1166
    %v1298 = vpop.f32.mrb[0].mxu0
    %v1299 = vadd.f32 0.0, %v1298
    %v1300 = vpop.f32.mrb[0].mxu0
    %1301 = vmatprep.mubr.f32.mxu0 0.0
    %1302 = vmatmul.mubr.f32.gmra.mrb[0].mxu0 %v1167
    %v1303 = vpop.f32.mrb[0].mxu0
    %v1304 = vadd.f32 0.0, %v1303
    %v1305 = vpop.f32.mrb[0].mxu0
    %1306 = vmatprep.mubr.f32.mxu0 0.0
    %1307 = vmatmul.mubr.f32.gmra.mrb[0].mxu0 %v1168
    %v1308 = vpop.f32.mrb[0].mxu0
    %v1309 = vadd.f32 0.0, %v1308
    %v1310 = vpop.f32.mrb[0].mxu0
    %1311 = vmatprep.mubr.f32.mxu0 0.0
    %1312 = vmatmul.mubr.f32.gmra.mrb[0].mxu0 %v1169
    %v1313 = vpop.f32.mrb[0].mxu0
    %v1314 = vadd.f32 0.0, %v1313
    %v1315 = vpop.f32.mrb[0].mxu0
    %1316 = vmatprep.mubr.f32.mxu0 0.0
    %1317 = vmatmul.mubr.f32.gmra.mrb[0].mxu0 %v1170
    %v1318 = vpop.f32.mrb[0].mxu0
    %v1319 = vadd.f32 0.0, %v1318
    %v1320 = vpop.f32.mrb[0].mxu0
    %1321 = vmatprep.mubr.f32.mxu0 0.0
    %1322 = vmatmul.mubr.f32.gmra.mrb[0].mxu0 %v1171
    %v1323 = vpop.f32.mrb[0].mxu0
    %v1324 = vadd.f32 0.0, %v1323
    %v1325 = vpop.f32.mrb[0].mxu0
    %1326 = vmatprep.mubr.f32.mxu0 0.0
    %1327 = vmatmul.mubr.f32.gmra.mrb[0].mxu0 %v1172
    %v1328 = vpop.f32.mrb[0].mxu0
    %v1329 = vadd.f32 0.0, %v1328
    %v1330 = vpop.f32.mrb[0].mxu0
    %1331 = vmatprep.mubr.f32.mxu0 0.0
    %1332 = vmatmul.mubr.f32.gmra.mrb[0].mxu0 %v1173
    %v1333 = vpop.f32.mrb[0].mxu0
    %v1334 = vadd.f32 0.0, %v1333
    %v1335 = vpop.f32.mrb[0].mxu0
    %1336 = vdwg.mxu0
    %v1337 = vsub.f32 %v1158, %v1259
    %v1338 = vsub.f32 %v1159, %v1264
    %v1339 = vsub.f32 %v1160, %v1269
    %v1340 = vsub.f32 %v1161, %v1274
    %v1341 = vsub.f32 %v1162, %v1279
    %v1342 = vsub.f32 %v1163, %v1284
    %v1343 = vsub.f32 %v1164, %v1289
    %v1344 = vsub.f32 %v1165, %v1294
    %v1345 = vsub.f32 %v1166, %v1299
    %v1346 = vsub.f32 %v1167, %v1304
    %v1347 = vsub.f32 %v1168, %v1309
    %v1348 = vsub.f32 %v1169, %v1314
    %v1349 = vsub.f32 %v1170, %v1319
    %v1350 = vsub.f32 %v1171, %v1324
    %v1351 = vsub.f32 %v1172, %v1329
    %v1352 = vsub.f32 %v1173, %v1334
    %v1353 = vmul.f32 %v1337, %v1337
    %v1354 = vmul.f32 %v1338, %v1338
    %v1355 = vmul.f32 %v1339, %v1339
    %v1356 = vmul.f32 %v1340, %v1340
    %v1357 = vmul.f32 %v1341, %v1341
    %v1358 = vmul.f32 %v1342, %v1342
    %v1359 = vmul.f32 %v1343, %v1343
    %v1360 = vmul.f32 %v1344, %v1344
    %v1361 = vmul.f32 %v1345, %v1345
    %v1362 = vmul.f32 %v1346, %v1346
    %v1363 = vmul.f32 %v1347, %v1347
    %v1364 = vmul.f32 %v1348, %v1348
    %v1365 = vmul.f32 %v1349, %v1349
    %v1366 = vmul.f32 %v1350, %v1350
    %v1367 = vmul.f32 %v1351, %v1351
    %v1368 = vmul.f32 %v1352, %v1352
    %1369 = vmatprep.subr.mxu0 0.0
    %1370 = vmatpush1.msra.mxu0 %v1174
    %1371 = vmatprep.subr.mxu0 0.0
    %1372 = vmatpush1.msra.mxu0 %v1175
    %1373 = vmatprep.subr.mxu0 0.0
    %1374 = vmatpush1.msra.mxu0 %v1176
    %1375 = vmatprep.subr.mxu0 0.0
    %1376 = vmatpush1.msra.mxu0 %v1177
    %1377 = vmatprep.subr.mxu0 0.0
    %1378 = vmatpush1.msra.mxu0 %v1178
    %1379 = vmatprep.subr.mxu0 0.0
    %1380 = vmatpush1.msra.mxu0 %v1179
    %1381 = vmatprep.subr.mxu0 0.0
    %1382 = vmatpush1.msra.mxu0 %v1180
    %1383 = vmatprep.subr.mxu0 0.0
    %1384 = vmatpush1.msra.mxu0 %v1181
    %1385 = vmatprep.subr.mxu0 0.0
    %1386 = vmatpush1.msra.mxu0 %v1182
    %1387 = vmatprep.subr.mxu0 0.0
    %1388 = vmatpush1.msra.mxu0 %v1183
    %1389 = vmatprep.subr.mxu0 0.0
    %1390 = vmatpush1.msra.mxu0 %v1184
    %1391 = vmatprep.subr.mxu0 0.0
    %1392 = vmatpush1.msra.mxu0 %v1185
    %1393 = vmatprep.subr.mxu0 0.0
    %1394 = vmatpush1.msra.mxu0 %v1186
    %1395 = vmatprep.subr.mxu0 0.0
    %1396 = vmatpush1.msra.mxu0 %v1187
    %1397 = vmatprep.subr.mxu0 0.0
    %1398 = vmatpush1.msra.mxu0 %v1188
    %1399 = vmatprep.subr.mxu0 0.0
    %1400 = vmatpush1.msra.mxu0 %v1189
    %1401 = vmatprep.subr.mxu0 0.0
    %1402 = vmatpush1.msra.mxu0 0.0
    %1403 = vmatprep.subr.mxu0 0.0
    %1404 = vmatpush1.msra.mxu0 0.0
    %1405 = vmatprep.subr.mxu0 0.0
    %1406 = vmatpush1.msra.mxu0 0.0
    %1407 = vmatprep.subr.mxu0 0.0
    %1408 = vmatpush1.msra.mxu0 0.0
    %1409 = vmatprep.subr.mxu0 0.0
    %1410 = vmatpush1.msra.mxu0 0.0
    %1411 = vmatprep.subr.mxu0 0.0
    %1412 = vmatpush1.msra.mxu0 0.0
    %1413 = vmatprep.subr.mxu0 0.0
    %1414 = vmatpush1.msra.mxu0 0.0
    %1415 = vmatprep.subr.mxu0 0.0
    %1416 = vmatpush1.msra.mxu0 0.0
    %1417 = vmatprep.subr.mxu0 0.0
    %1418 = vmatpush1.msra.mxu0 0.0
    %1419 = vmatprep.subr.mxu0 0.0
    %1420 = vmatpush1.msra.mxu0 0.0
    %1421 = vmatprep.subr.mxu0 0.0
    %1422 = vmatpush1.msra.mxu0 0.0
    %1423 = vmatprep.subr.mxu0 0.0
    %1424 = vmatpush1.msra.mxu0 0.0
    %1425 = vmatprep.subr.mxu0 0.0
    %1426 = vmatpush1.msra.mxu0 0.0
    %1427 = vmatprep.subr.mxu0 0.0
    %1428 = vmatpush1.msra.mxu0 0.0
    %1429 = vmatprep.subr.mxu0 0.0
    %1430 = vmatpush1.msra.mxu0 0.0
    %1431 = vmatprep.subr.mxu0 0.0
    %1432 = vmatpush1.msra.mxu0 0.0
    %1433 = vmatprep.mubr.f32.mxu0 0.0
    %1434 = vmatmul.mubr.f32.gmra.mrb[0].mxu0 %v1353
    %v1435 = vpop.f32.mrb[0].mxu0
    %v1436 = vadd.f32 1e-05, %v1435
    %v1437 = vpop.f32.mrb[0].mxu0
    %1438 = vmatprep.mubr.f32.mxu0 0.0
    %1439 = vmatmul.mubr.f32.gmra.mrb[0].mxu0 %v1354
    %v1440 = vpop.f32.mrb[0].mxu0
    %v1441 = vadd.f32 1e-05, %v1440
    %v1442 = vpop.f32.mrb[0].mxu0
    %1443 = vmatprep.mubr.f32.mxu0 0.0
    %1444 = vmatmul.mubr.f32.gmra.mrb[0].mxu0 %v1355
    %v1445 = vpop.f32.mrb[0].mxu0
    %v1446 = vadd.f32 1e-05, %v1445
    %v1447 = vpop.f32.mrb[0].mxu0
    %1448 = vmatprep.mubr.f32.mxu0 0.0
    %1449 = vmatmul.mubr.f32.gmra.mrb[0].mxu0 %v1356
    %v1450 = vpop.f32.mrb[0].mxu0
    %v1451 = vadd.f32 1e-05, %v1450
    %v1452 = vpop.f32.mrb[0].mxu0
    %1453 = vmatprep.mubr.f32.mxu0 0.0
    %1454 = vmatmul.mubr.f32.gmra.mrb[0].mxu0 %v1357
    %v1455 = vpop.f32.mrb[0].mxu0
    %v1456 = vadd.f32 1e-05, %v1455
    %v1457 = vpop.f32.mrb[0].mxu0
    %1458 = vmatprep.mubr.f32.mxu0 0.0
    %1459 = vmatmul.mubr.f32.gmra.mrb[0].mxu0 %v1358
    %v1460 = vpop.f32.mrb[0].mxu0
    %v1461 = vadd.f32 1e-05, %v1460
    %v1462 = vpop.f32.mrb[0].mxu0
    %1463 = vmatprep.mubr.f32.mxu0 0.0
    %1464 = vmatmul.mubr.f32.gmra.mrb[0].mxu0 %v1359
    %v1465 = vpop.f32.mrb[0].mxu0
    %v1466 = vadd.f32 1e-05, %v1465
    %v1467 = vpop.f32.mrb[0].mxu0
    %1468 = vmatprep.mubr.f32.mxu0 0.0
    %1469 = vmatmul.mubr.f32.gmra.mrb[0].mxu0 %v1360
    %v1470 = vpop.f32.mrb[0].mxu0
    %v1471 = vadd.f32 1e-05, %v1470
    %v1472 = vpop.f32.mrb[0].mxu0
    %1473 = vmatprep.mubr.f32.mxu0 0.0
    %1474 = vmatmul.mubr.f32.gmra.mrb[0].mxu0 %v1361
    %v1475 = vpop.f32.mrb[0].mxu0
    %v1476 = vadd.f32 1e-05, %v1475
    %v1477 = vpop.f32.mrb[0].mxu0
    %1478 = vmatprep.mubr.f32.mxu0 0.0
    %1479 = vmatmul.mubr.f32.gmra.mrb[0].mxu0 %v1362
    %v1480 = vpop.f32.mrb[0].mxu0
    %v1481 = vadd.f32 1e-05, %v1480
    %v1482 = vpop.f32.mrb[0].mxu0
    %1483 = vmatprep.mubr.f32.mxu0 0.0
    %1484 = vmatmul.mubr.f32.gmra.mrb[0].mxu0 %v1363
    %v1485 = vpop.f32.mrb[0].mxu0
    %v1486 = vadd.f32 1e-05, %v1485
    %v1487 = vpop.f32.mrb[0].mxu0
    %1488 = vmatprep.mubr.f32.mxu0 0.0
    %1489 = vmatmul.mubr.f32.gmra.mrb[0].mxu0 %v1364
    %v1490 = vpop.f32.mrb[0].mxu0
    %v1491 = vadd.f32 1e-05, %v1490
    %v1492 = vpop.f32.mrb[0].mxu0
    %1493 = vmatprep.mubr.f32.mxu0 0.0
    %1494 = vmatmul.mubr.f32.gmra.mrb[0].mxu0 %v1365
    %v1495 = vpop.f32.mrb[0].mxu0
    %v1496 = vadd.f32 1e-05, %v1495
    %v1497 = vpop.f32.mrb[0].mxu0
    %1498 = vmatprep.mubr.f32.mxu0 0.0
    %1499 = vmatmul.mubr.f32.gmra.mrb[0].mxu0 %v1366
    %v1500 = vpop.f32.mrb[0].mxu0
    %v1501 = vadd.f32 1e-05, %v1500
    %v1502 = vpop.f32.mrb[0].mxu0
    %1503 = vmatprep.mubr.f32.mxu0 0.0
    %1504 = vmatmul.mubr.f32.gmra.mrb[0].mxu0 %v1367
    %v1505 = vpop.f32.mrb[0].mxu0
    %v1506 = vadd.f32 1e-05, %v1505
    %v1507 = vpop.f32.mrb[0].mxu0
    %1508 = vmatprep.mubr.f32.mxu0 0.0
    %1509 = vmatmul.mubr.f32.gmra.mrb[0].mxu0 %v1368
    %v1510 = vpop.f32.mrb[0].mxu0
    %v1511 = vadd.f32 1e-05, %v1510
    %v1512 = vpop.f32.mrb[0].mxu0
    %1513 = vdwg.mxu0
    %v1514 = vrsqrt.pop %v1436
    %v1515 = vrsqrt.pop %v1441
    %v1516 = vrsqrt.pop %v1446
    %v1517 = vrsqrt.pop %v1451
    %v1518 = vrsqrt.pop %v1456
    %v1519 = vrsqrt.pop %v1461
    %v1520 = vrsqrt.pop %v1466
    %v1521 = vrsqrt.pop %v1471
    %v1522 = vrsqrt.pop %v1476
    %v1523 = vrsqrt.pop %v1481
    %v1524 = vrsqrt.pop %v1486
    %v1525 = vrsqrt.pop %v1491
    %v1526 = vrsqrt.pop %v1496
    %v1527 = vrsqrt.pop %v1501
    %v1528 = vrsqrt.pop %v1506
    %v1529 = vrsqrt.pop %v1511
    %v1530 = vmul.f32 %v1337, %v1514
    %v1531 = vmul.f32 %v1338, %v1515
    %v1532 = vmul.f32 %v1339, %v1516
    %v1533 = vmul.f32 %v1340, %v1517
    %v1534 = vmul.f32 %v1341, %v1518
    %v1535 = vmul.f32 %v1342, %v1519
    %v1536 = vmul.f32 %v1343, %v1520
    %v1537 = vmul.f32 %v1344, %v1521
    %v1538 = vmul.f32 %v1345, %v1522
    %v1539 = vmul.f32 %v1346, %v1523
    %v1540 = vmul.f32 %v1347, %v1524
    %v1541 = vmul.f32 %v1348, %v1525
    %v1542 = vmul.f32 %v1349, %v1526
    %v1543 = vmul.f32 %v1350, %v1527
    %v1544 = vmul.f32 %v1351, %v1528
    %v1545 = vmul.f32 %v1352, %v1529
    %v1547 = vlaneseq
    %v1548 = vshrl.u32 %v1547, 7
    %v1549 = vsub.s32 0, %v1548
    %v1550 = vrot.slane %v1190, %v1549
    %v1552 = vmul.f32 %v1530, %v1550
    %v1553 = vmul.f32 %v1531, %v1550
    %v1554 = vmul.f32 %v1532, %v1550
    %v1555 = vmul.f32 %v1533, %v1550
    %v1556 = vmul.f32 %v1534, %v1550
    %v1557 = vmul.f32 %v1535, %v1550
    %v1558 = vmul.f32 %v1536, %v1550
    %v1559 = vmul.f32 %v1537, %v1550
    %v1560 = vmul.f32 %v1538, %v1550
    %v1561 = vmul.f32 %v1539, %v1550
    %v1562 = vmul.f32 %v1540, %v1550
    %v1563 = vmul.f32 %v1541, %v1550
    %v1564 = vmul.f32 %v1542, %v1550
    %v1565 = vmul.f32 %v1543, %v1550
    %v1566 = vmul.f32 %v1544, %v1550
    %v1567 = vmul.f32 %v1545, %v1550
    %v1569 = vlaneseq
    %v1570 = vshrl.u32 %v1569, 7
    %v1571 = vsub.s32 0, %v1570
    %v1572 = vrot.slane %v1191, %v1571
    %v1574 = vadd.f32 %v1552, %v1572
    %v1575 = vadd.f32 %v1553, %v1572
    %v1576 = vadd.f32 %v1554, %v1572
    %v1577 = vadd.f32 %v1555, %v1572
    %v1578 = vadd.f32 %v1556, %v1572
    %v1579 = vadd.f32 %v1557, %v1572
    %v1580 = vadd.f32 %v1558, %v1572
    %v1581 = vadd.f32 %v1559, %v1572
    %v1582 = vadd.f32 %v1560, %v1572
    %v1583 = vadd.f32 %v1561, %v1572
    %v1584 = vadd.f32 %v1562, %v1572
    %v1585 = vadd.f32 %v1563, %v1572
    %v1586 = vadd.f32 %v1564, %v1572
    %v1587 = vadd.f32 %v1565, %v1572
    %v1588 = vadd.f32 %v1566, %v1572
    %v1589 = vadd.f32 %v1567, %v1572
    %v1590 = vxor.u32 %v1574, 2147483648
    %v1591 = vxor.u32 %v1575, 2147483648
    %v1592 = vxor.u32 %v1576, 2147483648
    %v1593 = vxor.u32 %v1577, 2147483648
    %v1594 = vxor.u32 %v1578, 2147483648
    %v1595 = vxor.u32 %v1579, 2147483648
    %v1596 = vxor.u32 %v1580, 2147483648
    %v1597 = vxor.u32 %v1581, 2147483648
    %v1598 = vxor.u32 %v1582, 2147483648
    %v1599 = vxor.u32 %v1583, 2147483648
    %v1600 = vxor.u32 %v1584, 2147483648
    %v1601 = vxor.u32 %v1585, 2147483648
    %v1602 = vxor.u32 %v1586, 2147483648
    %v1603 = vxor.u32 %v1587, 2147483648
    %v1604 = vxor.u32 %v1588, 2147483648
    %v1605 = vxor.u32 %v1589, 2147483648
    %v1606 = vmul.f32 %v1590, 1.442695
    %v1607 = vpow.pop %v1606
    %v1608 = vmul.f32 %v1591, 1.442695
    %v1609 = vpow.pop %v1608
    %v1610 = vmul.f32 %v1592, 1.442695
    %v1611 = vpow.pop %v1610
    %v1612 = vmul.f32 %v1593, 1.442695
    %v1613 = vpow.pop %v1612
    %v1614 = vmul.f32 %v1594, 1.442695
    %v1615 = vpow.pop %v1614
    %v1616 = vmul.f32 %v1595, 1.442695
    %v1617 = vpow.pop %v1616
    %v1618 = vmul.f32 %v1596, 1.442695
    %v1619 = vpow.pop %v1618
    %v1620 = vmul.f32 %v1597, 1.442695
    %v1621 = vpow.pop %v1620
    %v1622 = vmul.f32 %v1598, 1.442695
    %v1623 = vpow.pop %v1622
    %v1624 = vmul.f32 %v1599, 1.442695
    %v1625 = vpow.pop %v1624
    %v1626 = vmul.f32 %v1600, 1.442695
    %v1627 = vpow.pop %v1626
    %v1628 = vmul.f32 %v1601, 1.442695
    %v1629 = vpow.pop %v1628
    %v1630 = vmul.f32 %v1602, 1.442695
    %v1631 = vpow.pop %v1630
    %v1632 = vmul.f32 %v1603, 1.442695
    %v1633 = vpow.pop %v1632
    %v1634 = vmul.f32 %v1604, 1.442695
    %v1635 = vpow.pop %v1634
    %v1636 = vmul.f32 %v1605, 1.442695
    %v1637 = vpow.pop %v1636
    %v1638 = vadd.f32 %v1607, 1.0
    %v1639 = vadd.f32 %v1609, 1.0
    %v1640 = vadd.f32 %v1611, 1.0
    %v1641 = vadd.f32 %v1613, 1.0
    %v1642 = vadd.f32 %v1615, 1.0
    %v1643 = vadd.f32 %v1617, 1.0
    %v1644 = vadd.f32 %v1619, 1.0
    %v1645 = vadd.f32 %v1621, 1.0
    %v1646 = vadd.f32 %v1623, 1.0
    %v1647 = vadd.f32 %v1625, 1.0
    %v1648 = vadd.f32 %v1627, 1.0
    %v1649 = vadd.f32 %v1629, 1.0
    %v1650 = vadd.f32 %v1631, 1.0
    %v1651 = vadd.f32 %v1633, 1.0
    %v1652 = vadd.f32 %v1635, 1.0
    %v1653 = vadd.f32 %v1637, 1.0
    %v1654 = vrcp.pop %v1638
    %v1655 = vmul.f32 1.0, %v1654
    %v1656 = vrcp.pop %v1639
    %v1657 = vmul.f32 1.0, %v1656
    %v1658 = vrcp.pop %v1640
    %v1659 = vmul.f32 1.0, %v1658
    %v1660 = vrcp.pop %v1641
    %v1661 = vmul.f32 1.0, %v1660
    %v1662 = vrcp.pop %v1642
    %v1663 = vmul.f32 1.0, %v1662
    %v1664 = vrcp.pop %v1643
    %v1665 = vmul.f32 1.0, %v1664
    %v1666 = vrcp.pop %v1644
    %v1667 = vmul.f32 1.0, %v1666
    %v1668 = vrcp.pop %v1645
    %v1669 = vmul.f32 1.0, %v1668
    %v1670 = vrcp.pop %v1646
    %v1671 = vmul.f32 1.0, %v1670
    %v1672 = vrcp.pop %v1647
    %v1673 = vmul.f32 1.0, %v1672
    %v1674 = vrcp.pop %v1648
    %v1675 = vmul.f32 1.0, %v1674
    %v1676 = vrcp.pop %v1649
    %v1677 = vmul.f32 1.0, %v1676
    %v1678 = vrcp.pop %v1650
    %v1679 = vmul.f32 1.0, %v1678
    %v1680 = vrcp.pop %v1651
    %v1681 = vmul.f32 1.0, %v1680
    %v1682 = vrcp.pop %v1652
    %v1683 = vmul.f32 1.0, %v1682
    %v1684 = vrcp.pop %v1653
    %v1685 = vmul.f32 1.0, %v1684
    %v1686 = vmul.f32 %v1574, %v1655
    %v1687 = vmul.f32 %v1575, %v1657
    %v1688 = vmul.f32 %v1576, %v1659
    %v1689 = vmul.f32 %v1577, %v1661
    %v1690 = vmul.f32 %v1578, %v1663
    %v1691 = vmul.f32 %v1579, %v1665
    %v1692 = vmul.f32 %v1580, %v1667
    %v1693 = vmul.f32 %v1581, %v1669
    %v1694 = vmul.f32 %v1582, %v1671
    %v1695 = vmul.f32 %v1583, %v1673
    %v1696 = vmul.f32 %v1584, %v1675
    %v1697 = vmul.f32 %v1585, %v1677
    %v1698 = vmul.f32 %v1586, %v1679
    %v1699 = vmul.f32 %v1587, %v1681
    %v1700 = vmul.f32 %v1588, %v1683
    %v1701 = vmul.f32 %v1589, %v1685
    %v1702 = vld [vmem:[#allocation10] sm:$0xff]
    %v1703 = vld [vmem:[#allocation10 + $0x8] sm:$0xff]
    %v1704 = vld [vmem:[#allocation10 + $0x10] sm:$0xff]
    %v1705 = vld [vmem:[#allocation10 + $0x18] sm:$0xff]
    %v1706 = vld [vmem:[#allocation10 + $0x20] sm:$0xff]
    %v1707 = vld [vmem:[#allocation10 + $0x28] sm:$0xff]
    %v1708 = vld [vmem:[#allocation10 + $0x30] sm:$0xff]
    %v1709 = vld [vmem:[#allocation10 + $0x38] sm:$0xff]
    %v1710 = vld [vmem:[#allocation10 + $0x40] sm:$0xff]
    %v1711 = vld [vmem:[#allocation10 + $0x48] sm:$0xff]
    %v1712 = vld [vmem:[#allocation10 + $0x50] sm:$0xff]
    %v1713 = vld [vmem:[#allocation10 + $0x58] sm:$0xff]
    %v1714 = vld [vmem:[#allocation10 + $0x60] sm:$0xff]
    %v1715 = vld [vmem:[#allocation10 + $0x68] sm:$0xff]
    %v1716 = vld [vmem:[#allocation10 + $0x70] sm:$0xff]
    %v1717 = vld [vmem:[#allocation10 + $0x78] sm:$0xff]
    %1718 = vmatprep.subr.mxu0 0.0
    %1719 = vmatpush1.msra.mxu0 %v1702
    %1720 = vmatprep.subr.mxu0 0.0
    %1721 = vmatpush1.msra.mxu0 %v1703
    %1722 = vmatprep.subr.mxu0 0.0
    %1723 = vmatpush1.msra.mxu0 %v1704
    %1724 = vmatprep.subr.mxu0 0.0
    %1725 = vmatpush1.msra.mxu0 %v1705
    %1726 = vmatprep.subr.mxu0 0.0
    %1727 = vmatpush1.msra.mxu0 %v1706
    %1728 = vmatprep.subr.mxu0 0.0
    %1729 = vmatpush1.msra.mxu0 %v1707
    %1730 = vmatprep.subr.mxu0 0.0
    %1731 = vmatpush1.msra.mxu0 %v1708
    %1732 = vmatprep.subr.mxu0 0.0
    %1733 = vmatpush1.msra.mxu0 %v1709
    %1734 = vmatprep.subr.mxu0 0.0
    %1735 = vmatpush1.msra.mxu0 %v1710
    %1736 = vmatprep.subr.mxu0 0.0
    %1737 = vmatpush1.msra.mxu0 %v1711
    %1738 = vmatprep.subr.mxu0 0.0
    %1739 = vmatpush1.msra.mxu0 %v1712
    %1740 = vmatprep.subr.mxu0 0.0
    %1741 = vmatpush1.msra.mxu0 %v1713
    %1742 = vmatprep.subr.mxu0 0.0
    %1743 = vmatpush1.msra.mxu0 %v1714
    %1744 = vmatprep.subr.mxu0 0.0
    %1745 = vmatpush1.msra.mxu0 %v1715
    %1746 = vmatprep.subr.mxu0 0.0
    %1747 = vmatpush1.msra.mxu0 %v1716
    %1748 = vmatprep.subr.mxu0 0.0
    %1749 = vmatpush1.msra.mxu0 %v1717
    %1750 = vmatprep.subr.mxu0 0.0
    %1751 = vmatpush1.msra.mxu0 0.0
    %1752 = vmatprep.subr.mxu0 0.0
    %1753 = vmatpush1.msra.mxu0 0.0
    %1754 = vmatprep.subr.mxu0 0.0
    %1755 = vmatpush1.msra.mxu0 0.0
    %1756 = vmatprep.subr.mxu0 0.0
    %1757 = vmatpush1.msra.mxu0 0.0
    %1758 = vmatprep.subr.mxu0 0.0
    %1759 = vmatpush1.msra.mxu0 0.0
    %1760 = vmatprep.subr.mxu0 0.0
    %1761 = vmatpush1.msra.mxu0 0.0
    %1762 = vmatprep.subr.mxu0 0.0
    %1763 = vmatpush1.msra.mxu0 0.0
    %1764 = vmatprep.subr.mxu0 0.0
    %1765 = vmatpush1.msra.mxu0 0.0
    %1766 = vmatprep.subr.mxu0 0.0
    %1767 = vmatpush1.msra.mxu0 0.0
    %1768 = vmatprep.subr.mxu0 0.0
    %1769 = vmatpush1.msra.mxu0 0.0
    %1770 = vmatprep.subr.mxu0 0.0
    %1771 = vmatpush1.msra.mxu0 0.0
    %1772 = vmatprep.subr.mxu0 0.0
    %1773 = vmatpush1.msra.mxu0 0.0
    %1774 = vmatprep.subr.mxu0 0.0
    %1775 = vmatpush1.msra.mxu0 0.0
    %1776 = vmatprep.subr.mxu0 0.0
    %1777 = vmatpush1.msra.mxu0 0.0
    %1778 = vmatprep.subr.mxu0 0.0
    %1779 = vmatpush1.msra.mxu0 0.0
    %1780 = vmatprep.subr.mxu0 0.0
    %1781 = vmatpush1.msra.mxu0 0.0
    %1782 = vmatprep.mubr.f32.mxu0 0.0
    %1783 = vmatmul.mubr.f32.gmra.mrb[0].mxu0 %v1686
    %v1784 = vpop.f32.mrb[0].mxu0
    %v1785 = vadd.f32 0.0, %v1784
    %v1786 = vpop.f32.mrb[0].mxu0
    %1787 = vmatprep.mubr.f32.mxu0 0.0
    %1788 = vmatmul.mubr.f32.gmra.mrb[0].mxu0 %v1687
    %v1789 = vpop.f32.mrb[0].mxu0
    %v1790 = vadd.f32 0.0, %v1789
    %v1791 = vpop.f32.mrb[0].mxu0
    %1792 = vmatprep.mubr.f32.mxu0 0.0
    %1793 = vmatmul.mubr.f32.gmra.mrb[0].mxu0 %v1688
    %v1794 = vpop.f32.mrb[0].mxu0
    %v1795 = vadd.f32 0.0, %v1794
    %v1796 = vpop.f32.mrb[0].mxu0
    %1797 = vmatprep.mubr.f32.mxu0 0.0
    %1798 = vmatmul.mubr.f32.gmra.mrb[0].mxu0 %v1689
    %v1799 = vpop.f32.mrb[0].mxu0
    %v1800 = vadd.f32 0.0, %v1799
    %v1801 = vpop.f32.mrb[0].mxu0
    %1802 = vmatprep.mubr.f32.mxu0 0.0
    %1803 = vmatmul.mubr.f32.gmra.mrb[0].mxu0 %v1690
    %v1804 = vpop.f32.mrb[0].mxu0
    %v1805 = vadd.f32 0.0, %v1804
    %v1806 = vpop.f32.mrb[0].mxu0
    %1807 = vmatprep.mubr.f32.mxu0 0.0
    %1808 = vmatmul.mubr.f32.gmra.mrb[0].mxu0 %v1691
    %v1809 = vpop.f32.mrb[0].mxu0
    %v1810 = vadd.f32 0.0, %v1809
    %v1811 = vpop.f32.mrb[0].mxu0
    %1812 = vmatprep.mubr.f32.mxu0 0.0
    %1813 = vmatmul.mubr.f32.gmra.mrb[0].mxu0 %v1692
    %v1814 = vpop.f32.mrb[0].mxu0
    %v1815 = vadd.f32 0.0, %v1814
    %v1816 = vpop.f32.mrb[0].mxu0
    %1817 = vmatprep.mubr.f32.mxu0 0.0
    %1818 = vmatmul.mubr.f32.gmra.mrb[0].mxu0 %v1693
    %v1819 = vpop.f32.mrb[0].mxu0
    %v1820 = vadd.f32 0.0, %v1819
    %v1821 = vpop.f32.mrb[0].mxu0
    %1822 = vmatprep.mubr.f32.mxu0 0.0
    %1823 = vmatmul.mubr.f32.gmra.mrb[0].mxu0 %v1694
    %v1824 = vpop.f32.mrb[0].mxu0
    %v1825 = vadd.f32 0.0, %v1824
    %v1826 = vpop.f32.mrb[0].mxu0
    %1827 = vmatprep.mubr.f32.mxu0 0.0
    %1828 = vmatmul.mubr.f32.gmra.mrb[0].mxu0 %v1695
    %v1829 = vpop.f32.mrb[0].mxu0
    %v1830 = vadd.f32 0.0, %v1829
    %v1831 = vpop.f32.mrb[0].mxu0
    %1832 = vmatprep.mubr.f32.mxu0 0.0
    %1833 = vmatmul.mubr.f32.gmra.mrb[0].mxu0 %v1696
    %v1834 = vpop.f32.mrb[0].mxu0
    %v1835 = vadd.f32 0.0, %v1834
    %v1836 = vpop.f32.mrb[0].mxu0
    %1837 = vmatprep.mubr.f32.mxu0 0.0
    %1838 = vmatmul.mubr.f32.gmra.mrb[0].mxu0 %v1697
    %v1839 = vpop.f32.mrb[0].mxu0
    %v1840 = vadd.f32 0.0, %v1839
    %v1841 = vpop.f32.mrb[0].mxu0
    %1842 = vmatprep.mubr.f32.mxu0 0.0
    %1843 = vmatmul.mubr.f32.gmra.mrb[0].mxu0 %v1698
    %v1844 = vpop.f32.mrb[0].mxu0
    %v1845 = vadd.f32 0.0, %v1844
    %v1846 = vpop.f32.mrb[0].mxu0
    %1847 = vmatprep.mubr.f32.mxu0 0.0
    %1848 = vmatmul.mubr.f32.gmra.mrb[0].mxu0 %v1699
    %v1849 = vpop.f32.mrb[0].mxu0
    %v1850 = vadd.f32 0.0, %v1849
    %v1851 = vpop.f32.mrb[0].mxu0
    %1852 = vmatprep.mubr.f32.mxu0 0.0
    %1853 = vmatmul.mubr.f32.gmra.mrb[0].mxu0 %v1700
    %v1854 = vpop.f32.mrb[0].mxu0
    %v1855 = vadd.f32 0.0, %v1854
    %v1856 = vpop.f32.mrb[0].mxu0
    %1857 = vmatprep.mubr.f32.mxu0 0.0
    %1858 = vmatmul.mubr.f32.gmra.mrb[0].mxu0 %v1701
    %v1859 = vpop.f32.mrb[0].mxu0
    %v1860 = vadd.f32 0.0, %v1859
    %v1861 = vpop.f32.mrb[0].mxu0
    %1862 = vdwg.mxu0
    %v1863 = vld [vmem:[#allocation11] sm:$0xff]
    %v1864 = vld [vmem:[#allocation11 + $0x8] sm:$0xff]
    %v1865 = vld [vmem:[#allocation11 + $0x10] sm:$0xff]
    %v1866 = vld [vmem:[#allocation11 + $0x18] sm:$0xff]
    %v1867 = vld [vmem:[#allocation11 + $0x20] sm:$0xff]
    %v1868 = vld [vmem:[#allocation11 + $0x28] sm:$0xff]
    %v1869 = vld [vmem:[#allocation11 + $0x30] sm:$0xff]
    %v1870 = vld [vmem:[#allocation11 + $0x38] sm:$0xff]
    %v1871 = vld [vmem:[#allocation11 + $0x40] sm:$0xff]
    %v1872 = vld [vmem:[#allocation11 + $0x48] sm:$0xff]
    %v1873 = vld [vmem:[#allocation11 + $0x50] sm:$0xff]
    %v1874 = vld [vmem:[#allocation11 + $0x58] sm:$0xff]
    %v1875 = vld [vmem:[#allocation11 + $0x60] sm:$0xff]
    %v1876 = vld [vmem:[#allocation11 + $0x68] sm:$0xff]
    %v1877 = vld [vmem:[#allocation11 + $0x70] sm:$0xff]
    %v1878 = vld [vmem:[#allocation11 + $0x78] sm:$0xff]
    %1879 = vmatprep.subr.mxu0 0.0
    %1880 = vmatpush1.msra.mxu0 %v1863
    %1881 = vmatprep.subr.mxu0 0.0
    %1882 = vmatpush1.msra.mxu0 %v1864
    %1883 = vmatprep.subr.mxu0 0.0
    %1884 = vmatpush1.msra.mxu0 %v1865
    %1885 = vmatprep.subr.mxu0 0.0
    %1886 = vmatpush1.msra.mxu0 %v1866
    %1887 = vmatprep.subr.mxu0 0.0
    %1888 = vmatpush1.msra.mxu0 %v1867
    %1889 = vmatprep.subr.mxu0 0.0
    %1890 = vmatpush1.msra.mxu0 %v1868
    %1891 = vmatprep.subr.mxu0 0.0
    %1892 = vmatpush1.msra.mxu0 %v1869
    %1893 = vmatprep.subr.mxu0 0.0
    %1894 = vmatpush1.msra.mxu0 %v1870
    %1895 = vmatprep.subr.mxu0 0.0
    %1896 = vmatpush1.msra.mxu0 %v1871
    %1897 = vmatprep.subr.mxu0 0.0
    %1898 = vmatpush1.msra.mxu0 %v1872
    %1899 = vmatprep.subr.mxu0 0.0
    %1900 = vmatpush1.msra.mxu0 %v1873
    %1901 = vmatprep.subr.mxu0 0.0
    %1902 = vmatpush1.msra.mxu0 %v1874
    %1903 = vmatprep.subr.mxu0 0.0
    %1904 = vmatpush1.msra.mxu0 %v1875
    %1905 = vmatprep.subr.mxu0 0.0
    %1906 = vmatpush1.msra.mxu0 %v1876
    %1907 = vmatprep.subr.mxu0 0.0
    %1908 = vmatpush1.msra.mxu0 %v1877
    %1909 = vmatprep.subr.mxu0 0.0
    %1910 = vmatpush1.msra.mxu0 %v1878
    %1911 = vmatprep.subr.mxu0 0.0
    %1912 = vmatpush1.msra.mxu0 0.0
    %1913 = vmatprep.subr.mxu0 0.0
    %1914 = vmatpush1.msra.mxu0 0.0
    %1915 = vmatprep.subr.mxu0 0.0
    %1916 = vmatpush1.msra.mxu0 0.0
    %1917 = vmatprep.subr.mxu0 0.0
    %1918 = vmatpush1.msra.mxu0 0.0
    %1919 = vmatprep.subr.mxu0 0.0
    %1920 = vmatpush1.msra.mxu0 0.0
    %1921 = vmatprep.subr.mxu0 0.0
    %1922 = vmatpush1.msra.mxu0 0.0
    %1923 = vmatprep.subr.mxu0 0.0
    %1924 = vmatpush1.msra.mxu0 0.0
    %1925 = vmatprep.subr.mxu0 0.0
    %1926 = vmatpush1.msra.mxu0 0.0
    %1927 = vmatprep.subr.mxu0 0.0
    %1928 = vmatpush1.msra.mxu0 0.0
    %1929 = vmatprep.subr.mxu0 0.0
    %1930 = vmatpush1.msra.mxu0 0.0
    %1931 = vmatprep.subr.mxu0 0.0
    %1932 = vmatpush1.msra.mxu0 0.0
    %1933 = vmatprep.subr.mxu0 0.0
    %1934 = vmatpush1.msra.mxu0 0.0
    %1935 = vmatprep.subr.mxu0 0.0
    %1936 = vmatpush1.msra.mxu0 0.0
    %1937 = vmatprep.subr.mxu0 0.0
    %1938 = vmatpush1.msra.mxu0 0.0
    %1939 = vmatprep.subr.mxu0 0.0
    %1940 = vmatpush1.msra.mxu0 0.0
    %1941 = vmatprep.subr.mxu0 0.0
    %1942 = vmatpush1.msra.mxu0 0.0
    %1943 = vmatprep.mubr.f32.mxu0 0.0
    %1944 = vmatmul.mubr.f32.gmra.mrb[0].mxu0 %v157
    %v1945 = vpop.f32.mrb[0].mxu0
    %v1946 = vadd.f32 %v1785, %v1945
    %v1947 = vpop.f32.mrb[0].mxu0
    %1948 = vmatprep.mubr.f32.mxu0 0.0
    %1949 = vmatmul.mubr.f32.gmra.mrb[0].mxu0 %v158
    %v1950 = vpop.f32.mrb[0].mxu0
    %v1951 = vadd.f32 %v1790, %v1950
    %v1952 = vpop.f32.mrb[0].mxu0
    %1953 = vmatprep.mubr.f32.mxu0 0.0
    %1954 = vmatmul.mubr.f32.gmra.mrb[0].mxu0 %v159
    %v1955 = vpop.f32.mrb[0].mxu0
    %v1956 = vadd.f32 %v1795, %v1955
    %v1957 = vpop.f32.mrb[0].mxu0
    %1958 = vmatprep.mubr.f32.mxu0 0.0
    %1959 = vmatmul.mubr.f32.gmra.mrb[0].mxu0 %v160
    %v1960 = vpop.f32.mrb[0].mxu0
    %v1961 = vadd.f32 %v1800, %v1960
    %v1962 = vpop.f32.mrb[0].mxu0
    %1963 = vmatprep.mubr.f32.mxu0 0.0
    %1964 = vmatmul.mubr.f32.gmra.mrb[0].mxu0 %v161
    %v1965 = vpop.f32.mrb[0].mxu0
    %v1966 = vadd.f32 %v1805, %v1965
    %v1967 = vpop.f32.mrb[0].mxu0
    %1968 = vmatprep.mubr.f32.mxu0 0.0
    %1969 = vmatmul.mubr.f32.gmra.mrb[0].mxu0 %v162
    %v1970 = vpop.f32.mrb[0].mxu0
    %v1971 = vadd.f32 %v1810, %v1970
    %v1972 = vpop.f32.mrb[0].mxu0
    %1973 = vmatprep.mubr.f32.mxu0 0.0
    %1974 = vmatmul.mubr.f32.gmra.mrb[0].mxu0 %v163
    %v1975 = vpop.f32.mrb[0].mxu0
    %v1976 = vadd.f32 %v1815, %v1975
    %v1977 = vpop.f32.mrb[0].mxu0
    %1978 = vmatprep.mubr.f32.mxu0 0.0
    %1979 = vmatmul.mubr.f32.gmra.mrb[0].mxu0 %v164
    %v1980 = vpop.f32.mrb[0].mxu0
    %v1981 = vadd.f32 %v1820, %v1980
    %v1982 = vpop.f32.mrb[0].mxu0
    %1983 = vmatprep.mubr.f32.mxu0 0.0
    %1984 = vmatmul.mubr.f32.gmra.mrb[0].mxu0 %v165
    %v1985 = vpop.f32.mrb[0].mxu0
    %v1986 = vadd.f32 %v1825, %v1985
    %v1987 = vpop.f32.mrb[0].mxu0
    %1988 = vmatprep.mubr.f32.mxu0 0.0
    %1989 = vmatmul.mubr.f32.gmra.mrb[0].mxu0 %v166
    %v1990 = vpop.f32.mrb[0].mxu0
    %v1991 = vadd.f32 %v1830, %v1990
    %v1992 = vpop.f32.mrb[0].mxu0
    %1993 = vmatprep.mubr.f32.mxu0 0.0
    %1994 = vmatmul.mubr.f32.gmra.mrb[0].mxu0 %v167
    %v1995 = vpop.f32.mrb[0].mxu0
    %v1996 = vadd.f32 %v1835, %v1995
    %v1997 = vpop.f32.mrb[0].mxu0
    %1998 = vmatprep.mubr.f32.mxu0 0.0
    %1999 = vmatmul.mubr.f32.gmra.mrb[0].mxu0 %v168
    %v2000 = vpop.f32.mrb[0].mxu0
    %v2001 = vadd.f32 %v1840, %v2000
    %v2002 = vpop.f32.mrb[0].mxu0
    %2003 = vmatprep.mubr.f32.mxu0 0.0
    %2004 = vmatmul.mubr.f32.gmra.mrb[0].mxu0 %v169
    %v2005 = vpop.f32.mrb[0].mxu0
    %v2006 = vadd.f32 %v1845, %v2005
    %v2007 = vpop.f32.mrb[0].mxu0
    %2008 = vmatprep.mubr.f32.mxu0 0.0
    %2009 = vmatmul.mubr.f32.gmra.mrb[0].mxu0 %v170
    %v2010 = vpop.f32.mrb[0].mxu0
    %v2011 = vadd.f32 %v1850, %v2010
    %v2012 = vpop.f32.mrb[0].mxu0
    %2013 = vmatprep.mubr.f32.mxu0 0.0
    %2014 = vmatmul.mubr.f32.gmra.mrb[0].mxu0 %v171
    %v2015 = vpop.f32.mrb[0].mxu0
    %v2016 = vadd.f32 %v1855, %v2015
    %v2017 = vpop.f32.mrb[0].mxu0
    %2018 = vmatprep.mubr.f32.mxu0 0.0
    %2019 = vmatmul.mubr.f32.gmra.mrb[0].mxu0 %v172
    %v2020 = vpop.f32.mrb[0].mxu0
    %v2021 = vadd.f32 %v1860, %v2020
    %v2022 = vpop.f32.mrb[0].mxu0
    %2023 = vdwg.mxu0
    %v2024 = vld [vmem:[%s11] sm:$0x1]
    %v2026 = vlaneseq
    %v2027 = vshrl.u32 %v2026, 7
    %v2028 = vsub.s32 0, %v2027
    %v2029 = vrot.slane %v2024, %v2028
    %v2031 = vadd.f32 %v1946, %v2029
    %v2032 = vadd.f32 %v1951, %v2029
    %v2033 = vadd.f32 %v1956, %v2029
    %v2034 = vadd.f32 %v1961, %v2029
    %v2035 = vadd.f32 %v1966, %v2029
    %v2036 = vadd.f32 %v1971, %v2029
    %v2037 = vadd.f32 %v1976, %v2029
    %v2038 = vadd.f32 %v1981, %v2029
    %v2039 = vadd.f32 %v1986, %v2029
    %v2040 = vadd.f32 %v1991, %v2029
    %v2041 = vadd.f32 %v1996, %v2029
    %v2042 = vadd.f32 %v2001, %v2029
    %v2043 = vadd.f32 %v2006, %v2029
    %v2044 = vadd.f32 %v2011, %v2029
    %v2045 = vadd.f32 %v2016, %v2029
    %v2046 = vadd.f32 %v2021, %v2029
    %2047 = vst [vmem:[#allocation16] sm:$0xff] %v2031
    %2048 = vst [vmem:[#allocation16 + $0x8] sm:$0xff] %v2032
    %2049 = vst [vmem:[#allocation16 + $0x10] sm:$0xff] %v2033
    %2050 = vst [vmem:[#allocation16 + $0x18] sm:$0xff] %v2034
    %2051 = vst [vmem:[#allocation16 + $0x20] sm:$0xff] %v2035
    %2052 = vst [vmem:[#allocation16 + $0x28] sm:$0xff] %v2036
    %2053 = vst [vmem:[#allocation16 + $0x30] sm:$0xff] %v2037
    %2054 = vst [vmem:[#allocation16 + $0x38] sm:$0xff] %v2038
    %2055 = vst [vmem:[#allocation16 + $0x40] sm:$0xff] %v2039
    %2056 = vst [vmem:[#allocation16 + $0x48] sm:$0xff] %v2040
    %2057 = vst [vmem:[#allocation16 + $0x50] sm:$0xff] %v2041
    %2058 = vst [vmem:[#allocation16 + $0x58] sm:$0xff] %v2042
    %2059 = vst [vmem:[#allocation16 + $0x60] sm:$0xff] %v2043
    %2060 = vst [vmem:[#allocation16 + $0x68] sm:$0xff] %v2044
    %2061 = vst [vmem:[#allocation16 + $0x70] sm:$0xff] %v2045
    %2062 = vst [vmem:[#allocation16 + $0x78] sm:$0xff] %v2046
    // Predicated region
    $region90: #{tpu_custom_call.1} parent=1 // pred_check
      _
    $region91: #{tpu_custom_call.1} parent=1 // pred_check_branch
      %2064 = sbr.rel (0) target = $region93
    $region92: #{tpu_custom_call.1} parent=1 // pred_region
      %s2066 = ssub.s32 2048, 2048
      %2067 = vsyncadd [#allocation4], %s2066
      %s2068 = sshll.u32 [#allocation16], 4
      %s2069 = int_to_ptr.vmem [resolvable:$true] %s2068
      %2074 = dma.vmem_to_hbm [thread:$0]  %s2069, 2048, %s14, [#allocation4], 128, 128, 8
    $region93: #{tpu_custom_call.1} parent=1 // pred_fallthru
      _
    // Predicated region
    $region94: #{tpu_custom_call.1} parent=1 // pred_check
      _
    $region95: #{tpu_custom_call.1} parent=1 // pred_check_branch
      %2076 = sbr.rel (0) target = $region97
    $region96: #{tpu_custom_call.1} parent=1 // pred_region
      %2077 = dma.done [#allocation4], 2048
    $region97: #{tpu_custom_call.1} parent=1 // pred_fallthru
      _
    %2078 = vsyncpa [#allocation3], 1
    %2079 = vsyncpa [#allocation6], 1
    %2080 = vsyncpa [#allocation9], 1
    %2081 = vsyncpa [#allocation12], 1
    %2082 = vsyncpa [#allocation15], 1
    %2083 = vsyncpa [#allocation4], 1

</llo_original>
